<compile_context>
chip_gen: v6e
topology: v6e:2x2x1
jax: 0.10.0
libtpu: 0.0.40
codegen_flags: <defaults>
</compile_context>

<pallas_src>
import functools

import jax
import jax.numpy as jnp
import numpy as np
from jax.experimental import pallas as pl
from jax.experimental.pallas import tpu as pltpu

_BN_EPS = 1e-6          # matches norm_layer=partial(nn.BatchNorm2d, eps=1e-06)
_SUBLANE_PAD = 16       # pad M=C//4 to this (bf16 sublane tile; multiple of 8 for f32)


def _round_up(x, m):
    return (x + m - 1) // m * m


# ------------------------------ Pallas kernel ------------------------------
def _med_convblock_kernel(Nb, H, W, compute_dtype,
                          x_ref, masks_ref,
                          w1_ref, b1_ref,
                          w2_ref, b2_ref,
                          w3_ref, b3_ref,
                          o_ref):
    """One grid step: Nb images, each processed as a lane-dense (C, H*W) slab."""
    HW = H * W

    # Weights / biases / masks: loaded once per grid step, shared by all Nb
    # images in the block (const BlockSpecs keep them VMEM-resident).
    w1 = w1_ref[...]          # (Mp, C)    compute_dtype
    w2 = w2_ref[...]          # (Mp, 9*Mp) compute_dtype
    w3 = w3_ref[...]          # (C,  Mp)   compute_dtype
    b1 = b1_ref[...]          # (Mp, 1)    f32
    b2 = b2_ref[...]          # (Mp, 1)    f32
    b3 = b3_ref[...]          # (C,  1)    f32

    # Tap order t = 3*(dy+1) + (dx+1); per-tap 0/1 boundary masks were
    # precomputed on the host (hoisted out of the kernel entirely).
    tap_offsets = [dy * W + dx for dy in (-1, 0, 1) for dx in (-1, 0, 1)]
    mask_rows = [masks_ref[t:t + 1, :] for t in range(9)]   # each (1, HW)

    # Static unroll over the images in this block: amortizes per-step overhead
    # while keeping every op a simple 2-D (sublane, lane) op.
    for n in range(Nb):
        x = x_ref[n]                                         # (C, HW) f32
        xc = x.astype(compute_dtype)

        # ---- conv1 (1x1, BN folded) + bias + relu ----
        h1 = jnp.dot(w1, xc, preferred_element_type=jnp.float32)       # (Mp, HW)
        h1 = jnp.maximum(h1 + b1, 0.0).astype(compute_dtype)

        # ---- conv2 (3x3, stride 1, pad 1, BN folded) + bias + relu ----
        # Spatial index p = y*W + x lives on the lane axis; a (dy, dx) tap is
        # a lane roll by -(dy*W + dx) plus a 0/1 boundary mask (roll wraps
        # land exactly on out-of-image positions, which the mask zeroes).
        parts = []
        for t, off in enumerate(tap_offsets):
            if off == 0:
                parts.append(h1)                              # center tap: mask == 1
            else:
                rolled = pltpu.roll(h1, (-off) % HW, axis=1)
                parts.append(rolled * mask_rows[t])
        taps = jnp.concatenate(parts, axis=0)                 # (9*Mp, HW), aligned

        h2 = jnp.dot(w2, taps, preferred_element_type=jnp.float32)     # (Mp, HW)
        h2 = jnp.maximum(h2 + b2, 0.0).astype(compute_dtype)

        # ---- conv3 (1x1, BN folded) + bias + residual + relu ----
        h3 = jnp.dot(w3, h2, preferred_element_type=jnp.float32)       # (C, HW)
        o_ref[n] = jnp.maximum(h3 + b3 + x, 0.0).astype(o_ref.dtype)


# --------------------------------- wrapper ---------------------------------
def _make_tap_masks(H, W):
    """(9, H*W) 0/1 boundary masks, tap order t = 3*(dy+1) + (dx+1)."""
    pos = np.arange(H * W)
    row, col = pos // W, pos % W
    masks = []
    for dy in (-1, 0, 1):
        for dx in (-1, 0, 1):
            m = np.ones(H * W, np.float32)
            if dy == -1:
                m *= (row >= 1)
            elif dy == 1:
                m *= (row <= H - 2)
            if dx == -1:
                m *= (col >= 1)
            elif dx == 1:
                m *= (col <= W - 2)
            masks.append(m)
    return np.stack(masks, axis=0)


def _pick_block_batch(N, C, HW):
    """Largest divisor of N that keeps the per-step I/O block modest and
    leaves at least 2 grid steps when N >= 2 (both v7x TensorCores get work)."""
    io_bytes_per_image = 2 * 2 * C * HW * 4          # in+out, double-buffered, f32
    cap = max(1, (8 * 1024 * 1024) // io_bytes_per_image)
    best = 1
    for nb in range(1, N + 1):
        if N % nb or nb > cap:
            continue
        if N >= 2 and N // nb < 2:
            continue
        best = nb
    return best


def med_convblock_pallas(x_nchw, kparams, *, block_batch=None,
                         vmem_limit_bytes=48 * 1024 * 1024):
    """x_nchw: (N, C, H, W) float32 ; returns (N, C, H, W) float32."""
    N, C, H, W = x_nchw.shape
    HW = H * W
    compute_dtype = kparams["w1"].dtype              # bf16 (fast path) or f32

    Nb = _pick_block_batch(N, C, HW) if block_batch is None else block_batch
    assert N % Nb == 0, "block_batch must divide the batch size"
    steps = N // Nb

    x = x_nchw.reshape(N, C, HW).astype(jnp.float32)        # free reshape, no transpose
    masks = jnp.asarray(_make_tap_masks(H, W), dtype=compute_dtype)    # (9, HW)

    kernel = functools.partial(_med_convblock_kernel, Nb, H, W, compute_dtype)

    def const_spec(shape):
        ndim = len(shape)
        return pl.BlockSpec(shape, lambda g: (0,) * ndim)

    out = pl.pallas_call(
        kernel,
        out_shape=jax.ShapeDtypeStruct((N, C, HW), jnp.float32),
        grid_spec=pltpu.PrefetchScalarGridSpec(
            num_scalar_prefetch=0,
            grid=(steps,),
            in_specs=[
                pl.BlockSpec((Nb, C, HW), lambda g: (g, 0, 0)),
                const_spec(masks.shape),
                const_spec(kparams["w1"].shape), const_spec(kparams["b1"].shape),
                const_spec(kparams["w2"].shape), const_spec(kparams["b2"].shape),
                const_spec(kparams["w3"].shape), const_spec(kparams["b3"].shape),
            ],
            out_specs=pl.BlockSpec((Nb, C, HW), lambda g: (g, 0, 0)),
        ),
        compiler_params=pltpu.CompilerParams(
            dimension_semantics=("parallel",),               # image blocks independent
            vmem_limit_bytes=vmem_limit_bytes),
    )(x, masks,
      kparams["w1"], kparams["b1"],
      kparams["w2"], kparams["b2"],
      kparams["w3"], kparams["b3"])

    return out.reshape(N, C, H, W)


# -------------------------- parameter construction --------------------------
def make_raw_params(key, inplanes):
    """Synthetic PyTorch-like parameters (conv weights + BN running stats)."""
    C = inplanes
    M = C // 4
    ks = jax.random.split(key, 15)

    def bn(k0, k1, k2, k3, ch):
        gamma = 1.0 + 0.1 * jax.random.normal(k0, (ch,), jnp.float32)
        beta = 0.1 * jax.random.normal(k1, (ch,), jnp.float32)
        mean = 0.1 * jax.random.normal(k2, (ch,), jnp.float32)
        var = jnp.abs(jax.random.normal(k3, (ch,), jnp.float32)) + 0.5
        return gamma, beta, mean, var

    return {
        "w1": 0.1 * jax.random.normal(ks[0], (M, C, 1, 1), jnp.float32),
        "w2": 0.1 * jax.random.normal(ks[1], (M, M, 3, 3), jnp.float32),
        "w3": 0.1 * jax.random.normal(ks[2], (C, M, 1, 1), jnp.float32),
        "bn1": bn(ks[3], ks[4], ks[5], ks[6], M),
        "bn2": bn(ks[7], ks[8], ks[9], ks[10], M),
        "bn3": bn(ks[11], ks[12], ks[13], ks[14], C),
    }


def prepare_kernel_params(raw, compute_dtype=jnp.bfloat16):
    """Fold inference BN into the conv weights, zero-pad M = C//4 to a sublane
    multiple, lay conv2 out as (Mp, 9*Mp) tap-major columns, and cast the
    weights to the MXU compute dtype (biases stay f32)."""
    M, C = raw["w1"].shape[0], raw["w1"].shape[1]
    Mp = _round_up(M, _SUBLANE_PAD)

    def fold(bn_params):
        gamma, beta, mean, var = bn_params
        scale = gamma * jax.lax.rsqrt(var + _BN_EPS)
        return scale, beta - mean * scale

    s1, b1 = fold(raw["bn1"])
    s2, b2 = fold(raw["bn2"])
    s3, b3 = fold(raw["bn3"])

    # conv1: (M, C, 1, 1) -> (Mp, C), BN1 scale folded per out-channel.
    w1 = raw["w1"][:, :, 0, 0] * s1[:, None]
    w1 = jnp.zeros((Mp, C), jnp.float32).at[:M].set(w1)

    # conv2: (M, M, 3, 3) -> (Mp, 9*Mp); column = (3*kh + kw)*Mp + in_ch,
    # matching the in-kernel tap stacking order t = 3*(dy+1) + (dx+1).
    # TODO(synk): groups > 1 grouped 3x3 conv not implemented (module default groups=1).
    w2 = raw["w2"] * s2[:, None, None, None]
    w2p = jnp.zeros((Mp, Mp, 3, 3), jnp.float32).at[:M, :M].set(w2)
    w2 = w2p.transpose(0, 2, 3, 1).reshape(Mp, 9 * Mp)

    # conv3: (C, M, 1, 1) -> (C, Mp), BN3 scale folded per out-channel.
    w3 = raw["w3"][:, :, 0, 0] * s3[:, None]
    w3 = jnp.zeros((C, Mp), jnp.float32).at[:, :M].set(w3)

    b1p = jnp.zeros((Mp, 1), jnp.float32).at[:M, 0].set(b1)
    b2p = jnp.zeros((Mp, 1), jnp.float32).at[:M, 0].set(b2)

    return {
        "w1": w1.astype(compute_dtype), "b1": b1p,
        "w2": w2.astype(compute_dtype), "b2": b2p,
        "w3": w3.astype(compute_dtype), "b3": b3.reshape(C, 1),
    }


# ---------------------------- pure-JAX reference ----------------------------
def med_convblock_reference(x_nchw, raw):
    """f32 reference of the PyTorch forward (inference BatchNorm)."""
    dn = ("NCHW", "OIHW", "NCHW")

    def conv(v, w, pad):
        return jax.lax.conv_general_dilated(
            v, w, window_strides=(1, 1), padding=pad, dimension_numbers=dn)

    def bn(v, p):
        gamma, beta, mean, var = p
        scale = (gamma * jax.lax.rsqrt(var + _BN_EPS)).reshape(1, -1, 1, 1)
        shift = beta.reshape(1, -1, 1, 1) - mean.reshape(1, -1, 1, 1) * scale
        return v * scale + shift

    x = x_nchw.astype(jnp.float32)
    h = jax.nn.relu(bn(conv(x, raw["w1"], "VALID"), raw["bn1"]))
    h = jax.nn.relu(bn(conv(h, raw["w2"], ((1, 1), (1, 1))), raw["bn2"]))
    h = bn(conv(h, raw["w3"], "VALID"), raw["bn3"])
    return jax.nn.relu(h + x)


if __name__ == "__main__":
    key = jax.random.PRNGKey(0)
    k_x, k_p = jax.random.split(key)

    # inplanes=16 -> med_planes=4 (padded to 16); H*W = 256 (two 128-lane
    # tiles); batch 4 so the default heuristic fuses 2 images per grid step
    # while keeping 2 "parallel" grid steps (megacore friendly).
    N, C, H, W = 4, 16, 16, 16
    x = jax.random.normal(k_x, (N, C, H, W), jnp.float32)
    raw = make_raw_params(k_p, C)

    ref = jax.block_until_ready(med_convblock_reference(x, raw))

    # 1) f32 compute path: tight structural check against the reference.
    out_f32 = jax.block_until_ready(
        med_convblock_pallas(x, prepare_kernel_params(raw, jnp.float32)))
    np.testing.assert_allclose(np.asarray(out_f32), np.asarray(ref),
                               rtol=1e-3, atol=1e-3)

    # 2) bf16 MXU operands with f32 accumulation (the fast path); tolerance is
    #    looser only because weights/intermediates are rounded to bf16.
    out_bf16 = jax.block_until_ready(
        med_convblock_pallas(x, prepare_kernel_params(raw, jnp.bfloat16)))
    np.testing.assert_allclose(np.asarray(out_bf16), np.asarray(ref),
                               rtol=2e-2, atol=2e-2)

    print("KERNEL_OK")
</pallas_src>

<mosaic_0001>
module attributes {stable_mosaic.version = 11 : i64} {
  func.func @_med_convblock_kernel(%arg0: i32, %arg1: memref<2x16x256xf32, #tpu.memory_space<vmem>>, %arg2: memref<9x256xf32, #tpu.memory_space<vmem>>, %arg3: memref<16x16xf32, #tpu.memory_space<vmem>>, %arg4: memref<16x1xf32, #tpu.memory_space<vmem>>, %arg5: memref<16x144xf32, #tpu.memory_space<vmem>>, %arg6: memref<16x1xf32, #tpu.memory_space<vmem>>, %arg7: memref<16x16xf32, #tpu.memory_space<vmem>>, %arg8: memref<16x1xf32, #tpu.memory_space<vmem>>, %arg9: memref<2x16x256xf32, #tpu.memory_space<vmem>>) attributes {dimension_semantics = [#tpu.dimension_semantics<parallel>], iteration_bounds = array<i64: 2>, scalar_prefetch = 0 : i64, scratch_operands = 0 : i64, tpu.core_type = #tpu.core_type<tc>, window_params = [{transform_indices = @transform_0, window_bounds = array<i64: 2, 16, 256>}, {pipeline_mode = #tpu.pipeline_mode<synchronous>, transform_indices = @transform_1, window_bounds = array<i64: 9, 256>}, {pipeline_mode = #tpu.pipeline_mode<synchronous>, transform_indices = @transform_2, window_bounds = array<i64: 16, 16>}, {pipeline_mode = #tpu.pipeline_mode<synchronous>, transform_indices = @transform_3, window_bounds = array<i64: 16, 1>}, {pipeline_mode = #tpu.pipeline_mode<synchronous>, transform_indices = @transform_4, window_bounds = array<i64: 16, 144>}, {pipeline_mode = #tpu.pipeline_mode<synchronous>, transform_indices = @transform_5, window_bounds = array<i64: 16, 1>}, {pipeline_mode = #tpu.pipeline_mode<synchronous>, transform_indices = @transform_6, window_bounds = array<i64: 16, 16>}, {pipeline_mode = #tpu.pipeline_mode<synchronous>, transform_indices = @transform_7, window_bounds = array<i64: 16, 1>}, {transform_indices = @transform_8, window_bounds = array<i64: 2, 16, 256>}]} {
    %c0 = arith.constant 0 : index
    %c0_0 = arith.constant 0 : index
    %0 = vector.load %arg3[%c0, %c0_0] : memref<16x16xf32, #tpu.memory_space<vmem>>, vector<16x16xf32>
    %c0_1 = arith.constant 0 : index
    %c0_2 = arith.constant 0 : index
    %1 = vector.load %arg5[%c0_1, %c0_2] : memref<16x144xf32, #tpu.memory_space<vmem>>, vector<16x144xf32>
    %c0_3 = arith.constant 0 : index
    %c0_4 = arith.constant 0 : index
    %2 = vector.load %arg7[%c0_3, %c0_4] : memref<16x16xf32, #tpu.memory_space<vmem>>, vector<16x16xf32>
    %c0_5 = arith.constant 0 : index
    %c0_6 = arith.constant 0 : index
    %3 = vector.load %arg4[%c0_5, %c0_6] : memref<16x1xf32, #tpu.memory_space<vmem>>, vector<16x1xf32>
    %c0_7 = arith.constant 0 : index
    %c0_8 = arith.constant 0 : index
    %4 = vector.load %arg6[%c0_7, %c0_8] : memref<16x1xf32, #tpu.memory_space<vmem>>, vector<16x1xf32>
    %c0_9 = arith.constant 0 : index
    %c0_10 = arith.constant 0 : index
    %5 = vector.load %arg8[%c0_9, %c0_10] : memref<16x1xf32, #tpu.memory_space<vmem>>, vector<16x1xf32>
    %c0_11 = arith.constant 0 : index
    %c0_12 = arith.constant 0 : index
    %6 = vector.load %arg2[%c0_11, %c0_12] : memref<9x256xf32, #tpu.memory_space<vmem>>, vector<1x256xf32>
    %c1 = arith.constant 1 : index
    %c0_13 = arith.constant 0 : index
    %7 = vector.load %arg2[%c1, %c0_13] : memref<9x256xf32, #tpu.memory_space<vmem>>, vector<1x256xf32>
    %c2 = arith.constant 2 : index
    %c0_14 = arith.constant 0 : index
    %8 = vector.load %arg2[%c2, %c0_14] : memref<9x256xf32, #tpu.memory_space<vmem>>, vector<1x256xf32>
    %c3 = arith.constant 3 : index
    %c0_15 = arith.constant 0 : index
    %9 = vector.load %arg2[%c3, %c0_15] : memref<9x256xf32, #tpu.memory_space<vmem>>, vector<1x256xf32>
    %c5 = arith.constant 5 : index
    %c0_16 = arith.constant 0 : index
    %10 = vector.load %arg2[%c5, %c0_16] : memref<9x256xf32, #tpu.memory_space<vmem>>, vector<1x256xf32>
    %c6 = arith.constant 6 : index
    %c0_17 = arith.constant 0 : index
    %11 = vector.load %arg2[%c6, %c0_17] : memref<9x256xf32, #tpu.memory_space<vmem>>, vector<1x256xf32>
    %c7 = arith.constant 7 : index
    %c0_18 = arith.constant 0 : index
    %12 = vector.load %arg2[%c7, %c0_18] : memref<9x256xf32, #tpu.memory_space<vmem>>, vector<1x256xf32>
    %c8 = arith.constant 8 : index
    %c0_19 = arith.constant 0 : index
    %13 = vector.load %arg2[%c8, %c0_19] : memref<9x256xf32, #tpu.memory_space<vmem>>, vector<1x256xf32>
    %c0_20 = arith.constant 0 : index
    %c0_21 = arith.constant 0 : index
    %c0_22 = arith.constant 0 : index
    %14 = vector.load %arg1[%c0_20, %c0_21, %c0_22] : memref<2x16x256xf32, #tpu.memory_space<vmem>>, vector<1x16x256xf32>
    %15 = vector.shape_cast %14 : vector<1x16x256xf32> to vector<16x256xf32>
    %cst = arith.constant dense<0.000000e+00> : vector<16x256xf32>
    %16 = tpu.matmul %0, %15, %cst {dimension_numbers = #tpu.dot_dimension_numbers<[1], [0], [0], [1], [0, 0, 1, 1], [], []>} : vector<16x16xf32>, vector<16x256xf32>, vector<16x256xf32> -> vector<16x256xf32>
    %17 = vector.broadcast %3 : vector<16x1xf32> to vector<16x256xf32>
    %18 = arith.addf %16, %17 : vector<16x256xf32>
    %cst_23 = arith.constant 0.000000e+00 : f32
    %19 = vector.broadcast %cst_23 : f32 to vector<16x256xf32>
    %20 = arith.maximumf %18, %19 : vector<16x256xf32>
    %c17_i32 = arith.constant 17 : i32
    %21 = tpu.dynamic_rotate %20 by %c17_i32 dim 1 : vector<16x256xf32>, i32 -> vector<16x256xf32>
    %22 = vector.broadcast %6 : vector<1x256xf32> to vector<16x256xf32>
    %23 = arith.mulf %21, %22 : vector<16x256xf32>
    %c16_i32 = arith.constant 16 : i32
    %24 = tpu.dynamic_rotate %20 by %c16_i32 dim 1 : vector<16x256xf32>, i32 -> vector<16x256xf32>
    %25 = vector.broadcast %7 : vector<1x256xf32> to vector<16x256xf32>
    %26 = arith.mulf %24, %25 : vector<16x256xf32>
    %c15_i32 = arith.constant 15 : i32
    %27 = tpu.dynamic_rotate %20 by %c15_i32 dim 1 : vector<16x256xf32>, i32 -> vector<16x256xf32>
    %28 = vector.broadcast %8 : vector<1x256xf32> to vector<16x256xf32>
    %29 = arith.mulf %27, %28 : vector<16x256xf32>
    %c1_i32 = arith.constant 1 : i32
    %30 = tpu.dynamic_rotate %20 by %c1_i32 dim 1 : vector<16x256xf32>, i32 -> vector<16x256xf32>
    %31 = vector.broadcast %9 : vector<1x256xf32> to vector<16x256xf32>
    %32 = arith.mulf %30, %31 : vector<16x256xf32>
    %c255_i32 = arith.constant 255 : i32
    %33 = tpu.dynamic_rotate %20 by %c255_i32 dim 1 : vector<16x256xf32>, i32 -> vector<16x256xf32>
    %34 = vector.broadcast %10 : vector<1x256xf32> to vector<16x256xf32>
    %35 = arith.mulf %33, %34 : vector<16x256xf32>
    %c241_i32 = arith.constant 241 : i32
    %36 = tpu.dynamic_rotate %20 by %c241_i32 dim 1 : vector<16x256xf32>, i32 -> vector<16x256xf32>
    %37 = vector.broadcast %11 : vector<1x256xf32> to vector<16x256xf32>
    %38 = arith.mulf %36, %37 : vector<16x256xf32>
    %c240_i32 = arith.constant 240 : i32
    %39 = tpu.dynamic_rotate %20 by %c240_i32 dim 1 : vector<16x256xf32>, i32 -> vector<16x256xf32>
    %40 = vector.broadcast %12 : vector<1x256xf32> to vector<16x256xf32>
    %41 = arith.mulf %39, %40 : vector<16x256xf32>
    %c239_i32 = arith.constant 239 : i32
    %42 = tpu.dynamic_rotate %20 by %c239_i32 dim 1 : vector<16x256xf32>, i32 -> vector<16x256xf32>
    %43 = vector.broadcast %13 : vector<1x256xf32> to vector<16x256xf32>
    %44 = arith.mulf %42, %43 : vector<16x256xf32>
    %45 = tpu.concatenate %23, %26, %29, %32, %20, %35, %38, %41, %44 in 0 : vector<16x256xf32>, vector<16x256xf32>, vector<16x256xf32>, vector<16x256xf32>, vector<16x256xf32>, vector<16x256xf32>, vector<16x256xf32>, vector<16x256xf32>, vector<16x256xf32> -> vector<144x256xf32>
    %cst_24 = arith.constant dense<0.000000e+00> : vector<16x256xf32>
    %46 = tpu.matmul %1, %45, %cst_24 {dimension_numbers = #tpu.dot_dimension_numbers<[1], [0], [0], [1], [0, 0, 1, 1], [], []>} : vector<16x144xf32>, vector<144x256xf32>, vector<16x256xf32> -> vector<16x256xf32>
    %47 = vector.broadcast %4 : vector<16x1xf32> to vector<16x256xf32>
    %48 = arith.addf %46, %47 : vector<16x256xf32>
    %cst_25 = arith.constant 0.000000e+00 : f32
    %49 = vector.broadcast %cst_25 : f32 to vector<16x256xf32>
    %50 = arith.maximumf %48, %49 : vector<16x256xf32>
    %cst_26 = arith.constant dense<0.000000e+00> : vector<16x256xf32>
    %51 = tpu.matmul %2, %50, %cst_26 {dimension_numbers = #tpu.dot_dimension_numbers<[1], [0], [0], [1], [0, 0, 1, 1], [], []>} : vector<16x16xf32>, vector<16x256xf32>, vector<16x256xf32> -> vector<16x256xf32>
    %52 = vector.broadcast %5 : vector<16x1xf32> to vector<16x256xf32>
    %53 = arith.addf %51, %52 : vector<16x256xf32>
    %54 = arith.addf %53, %15 : vector<16x256xf32>
    %cst_27 = arith.constant 0.000000e+00 : f32
    %55 = vector.broadcast %cst_27 : f32 to vector<16x256xf32>
    %56 = arith.maximumf %54, %55 : vector<16x256xf32>
    %c0_28 = arith.constant 0 : index
    %c0_29 = arith.constant 0 : index
    %c0_30 = arith.constant 0 : index
    %57 = vector.load %arg9[%c0_28, %c0_29, %c0_30] : memref<2x16x256xf32, #tpu.memory_space<vmem>>, vector<1x16x256xf32>
    %58 = vector.shape_cast %57 : vector<1x16x256xf32> to vector<16x256xf32>
    %59 = vector.shape_cast %56 : vector<16x256xf32> to vector<1x16x256xf32>
    tpu.vector_store %arg9[%c0_28, %c0_29, %c0_30], %59 {strides = array<i32>} : memref<2x16x256xf32, #tpu.memory_space<vmem>>, vector<1x16x256xf32>,
    %c1_31 = arith.constant 1 : index
    %c0_32 = arith.constant 0 : index
    %c0_33 = arith.constant 0 : index
    %60 = vector.load %arg1[%c1_31, %c0_32, %c0_33] : memref<2x16x256xf32, #tpu.memory_space<vmem>>, vector<1x16x256xf32>
    %61 = vector.shape_cast %60 : vector<1x16x256xf32> to vector<16x256xf32>
    %cst_34 = arith.constant dense<0.000000e+00> : vector<16x256xf32>
    %62 = tpu.matmul %0, %61, %cst_34 {dimension_numbers = #tpu.dot_dimension_numbers<[1], [0], [0], [1], [0, 0, 1, 1], [], []>} : vector<16x16xf32>, vector<16x256xf32>, vector<16x256xf32> -> vector<16x256xf32>
    %63 = vector.broadcast %3 : vector<16x1xf32> to vector<16x256xf32>
    %64 = arith.addf %62, %63 : vector<16x256xf32>
    %cst_35 = arith.constant 0.000000e+00 : f32
    %65 = vector.broadcast %cst_35 : f32 to vector<16x256xf32>
    %66 = arith.maximumf %64, %65 : vector<16x256xf32>
    %c17_i32_36 = arith.constant 17 : i32
    %67 = tpu.dynamic_rotate %66 by %c17_i32_36 dim 1 : vector<16x256xf32>, i32 -> vector<16x256xf32>
    %68 = vector.broadcast %6 : vector<1x256xf32> to vector<16x256xf32>
    %69 = arith.mulf %67, %68 : vector<16x256xf32>
    %c16_i32_37 = arith.constant 16 : i32
    %70 = tpu.dynamic_rotate %66 by %c16_i32_37 dim 1 : vector<16x256xf32>, i32 -> vector<16x256xf32>
    %71 = vector.broadcast %7 : vector<1x256xf32> to vector<16x256xf32>
    %72 = arith.mulf %70, %71 : vector<16x256xf32>
    %c15_i32_38 = arith.constant 15 : i32
    %73 = tpu.dynamic_rotate %66 by %c15_i32_38 dim 1 : vector<16x256xf32>, i32 -> vector<16x256xf32>
    %74 = vector.broadcast %8 : vector<1x256xf32> to vector<16x256xf32>
    %75 = arith.mulf %73, %74 : vector<16x256xf32>
    %c1_i32_39 = arith.constant 1 : i32
    %76 = tpu.dynamic_rotate %66 by %c1_i32_39 dim 1 : vector<16x256xf32>, i32 -> vector<16x256xf32>
    %77 = vector.broadcast %9 : vector<1x256xf32> to vector<16x256xf32>
    %78 = arith.mulf %76, %77 : vector<16x256xf32>
    %c255_i32_40 = arith.constant 255 : i32
    %79 = tpu.dynamic_rotate %66 by %c255_i32_40 dim 1 : vector<16x256xf32>, i32 -> vector<16x256xf32>
    %80 = vector.broadcast %10 : vector<1x256xf32> to vector<16x256xf32>
    %81 = arith.mulf %79, %80 : vector<16x256xf32>
    %c241_i32_41 = arith.constant 241 : i32
    %82 = tpu.dynamic_rotate %66 by %c241_i32_41 dim 1 : vector<16x256xf32>, i32 -> vector<16x256xf32>
    %83 = vector.broadcast %11 : vector<1x256xf32> to vector<16x256xf32>
    %84 = arith.mulf %82, %83 : vector<16x256xf32>
    %c240_i32_42 = arith.constant 240 : i32
    %85 = tpu.dynamic_rotate %66 by %c240_i32_42 dim 1 : vector<16x256xf32>, i32 -> vector<16x256xf32>
    %86 = vector.broadcast %12 : vector<1x256xf32> to vector<16x256xf32>
    %87 = arith.mulf %85, %86 : vector<16x256xf32>
    %c239_i32_43 = arith.constant 239 : i32
    %88 = tpu.dynamic_rotate %66 by %c239_i32_43 dim 1 : vector<16x256xf32>, i32 -> vector<16x256xf32>
    %89 = vector.broadcast %13 : vector<1x256xf32> to vector<16x256xf32>
    %90 = arith.mulf %88, %89 : vector<16x256xf32>
    %91 = tpu.concatenate %69, %72, %75, %78, %66, %81, %84, %87, %90 in 0 : vector<16x256xf32>, vector<16x256xf32>, vector<16x256xf32>, vector<16x256xf32>, vector<16x256xf32>, vector<16x256xf32>, vector<16x256xf32>, vector<16x256xf32>, vector<16x256xf32> -> vector<144x256xf32>
    %cst_44 = arith.constant dense<0.000000e+00> : vector<16x256xf32>
    %92 = tpu.matmul %1, %91, %cst_44 {dimension_numbers = #tpu.dot_dimension_numbers<[1], [0], [0], [1], [0, 0, 1, 1], [], []>} : vector<16x144xf32>, vector<144x256xf32>, vector<16x256xf32> -> vector<16x256xf32>
    %93 = vector.broadcast %4 : vector<16x1xf32> to vector<16x256xf32>
    %94 = arith.addf %92, %93 : vector<16x256xf32>
    %cst_45 = arith.constant 0.000000e+00 : f32
    %95 = vector.broadcast %cst_45 : f32 to vector<16x256xf32>
    %96 = arith.maximumf %94, %95 : vector<16x256xf32>
    %cst_46 = arith.constant dense<0.000000e+00> : vector<16x256xf32>
    %97 = tpu.matmul %2, %96, %cst_46 {dimension_numbers = #tpu.dot_dimension_numbers<[1], [0], [0], [1], [0, 0, 1, 1], [], []>} : vector<16x16xf32>, vector<16x256xf32>, vector<16x256xf32> -> vector<16x256xf32>
    %98 = vector.broadcast %5 : vector<16x1xf32> to vector<16x256xf32>
    %99 = arith.addf %97, %98 : vector<16x256xf32>
    %100 = arith.addf %99, %61 : vector<16x256xf32>
    %cst_47 = arith.constant 0.000000e+00 : f32
    %101 = vector.broadcast %cst_47 : f32 to vector<16x256xf32>
    %102 = arith.maximumf %100, %101 : vector<16x256xf32>
    %c1_48 = arith.constant 1 : index
    %c0_49 = arith.constant 0 : index
    %c0_50 = arith.constant 0 : index
    %103 = vector.load %arg9[%c1_48, %c0_49, %c0_50] : memref<2x16x256xf32, #tpu.memory_space<vmem>>, vector<1x16x256xf32>
    %104 = vector.shape_cast %103 : vector<1x16x256xf32> to vector<16x256xf32>
    %105 = vector.shape_cast %102 : vector<16x256xf32> to vector<1x16x256xf32>
    tpu.vector_store %arg9[%c1_48, %c0_49, %c0_50], %105 {strides = array<i32>} : memref<2x16x256xf32, #tpu.memory_space<vmem>>, vector<1x16x256xf32>,
    return
  }
  func.func @transform_0(%arg0: i32) -> (i32, i32, i32) {
    %c0_i32 = arith.constant 0 : i32
    %c0_i32_0 = arith.constant 0 : i32
    %c0_i32_1 = arith.constant 0 : i32
    return %arg0, %c0_i32, %c0_i32_0 : i32, i32, i32
  }
  func.func @transform_1(%arg0: i32) -> (i32, i32) {
    %c0_i32 = arith.constant 0 : i32
    %c0_i32_0 = arith.constant 0 : i32
    %c0_i32_1 = arith.constant 0 : i32
    return %c0_i32, %c0_i32_0 : i32, i32
  }
  func.func @transform_2(%arg0: i32) -> (i32, i32) {
    %c0_i32 = arith.constant 0 : i32
    %c0_i32_0 = arith.constant 0 : i32
    %c0_i32_1 = arith.constant 0 : i32
    return %c0_i32, %c0_i32_0 : i32, i32
  }
  func.func @transform_3(%arg0: i32) -> (i32, i32) {
    %c0_i32 = arith.constant 0 : i32
    %c0_i32_0 = arith.constant 0 : i32
    %c0_i32_1 = arith.constant 0 : i32
    return %c0_i32, %c0_i32_0 : i32, i32
  }
  func.func @transform_4(%arg0: i32) -> (i32, i32) {
    %c0_i32 = arith.constant 0 : i32
    %c0_i32_0 = arith.constant 0 : i32
    %c0_i32_1 = arith.constant 0 : i32
    return %c0_i32, %c0_i32_0 : i32, i32
  }
  func.func @transform_5(%arg0: i32) -> (i32, i32) {
    %c0_i32 = arith.constant 0 : i32
    %c0_i32_0 = arith.constant 0 : i32
    %c0_i32_1 = arith.constant 0 : i32
    return %c0_i32, %c0_i32_0 : i32, i32
  }
  func.func @transform_6(%arg0: i32) -> (i32, i32) {
    %c0_i32 = arith.constant 0 : i32
    %c0_i32_0 = arith.constant 0 : i32
    %c0_i32_1 = arith.constant 0 : i32
    return %c0_i32, %c0_i32_0 : i32, i32
  }
  func.func @transform_7(%arg0: i32) -> (i32, i32) {
    %c0_i32 = arith.constant 0 : i32
    %c0_i32_0 = arith.constant 0 : i32
    %c0_i32_1 = arith.constant 0 : i32
    return %c0_i32, %c0_i32_0 : i32, i32
  }
  func.func @transform_8(%arg0: i32) -> (i32, i32, i32) {
    %c0_i32 = arith.constant 0 : i32
    %c0_i32_0 = arith.constant 0 : i32
    %c0_i32_1 = arith.constant 0 : i32
    return %arg0, %c0_i32, %c0_i32_0 : i32, i32, i32
  }
}

</mosaic_0001>

<llo_original>
// kernel: tpu_custom_call.1
$region0: #{tpu_custom_call.1}
  #allocation0 [shape = 'u32[]', space=smem, size = 0x4, offset = 0x4, fixed_abs, tag = 'smem constant byte address 0x4 - core index']
  #allocation1 [shape = 'u32[144,128]{1,0:T(1,128)}', space=vmem, size = 0x12000, scoped, tag = 'internal scratch']
  %s0 = inlined_call_operand.hbm [shape: f32[4,16,256], index: 0, kind: input, shape index: {}]
  %s1 = inlined_call_operand.vmem [shape: f32[9,256], index: 1, kind: input, shape index: {}]
  %s2 = inlined_call_operand.vmem [shape: f32[16,16], index: 2, kind: input, shape index: {}]
  %s3 = inlined_call_operand.vmem [shape: f32[16,1], index: 3, kind: input, shape index: {}]
  %s4 = inlined_call_operand.hbm [shape: f32[16,144], index: 4, kind: input, shape index: {}]
  %s5 = inlined_call_operand.vmem [shape: f32[16,1], index: 5, kind: input, shape index: {}]
  %s6 = inlined_call_operand.hbm [shape: f32[16,16], index: 6, kind: input, shape index: {}]
  %s7 = inlined_call_operand.vmem [shape: f32[16,1], index: 7, kind: input, shape index: {}]
  %s8 = inlined_call_operand.hbm [shape: f32[4,16,256], index: 8, kind: output, shape index: {}]
  %s9 = sld [smem:[#allocation0]]
  $region77: #{tpu_custom_call.1} parent=0
    _
  %s11 = ssub.s32 1, %s9
  %s12 = scalar_select 0, %s11, %s9
  $region1: #{tpu_custom_call.1} parent=0
    #allocation2 [shape = 'u8[65536]{0}', space=vmem, size = 0x10000, scoped, tag = 'input window, operand 0']
    #allocation3 [shape = 's32[2]{0}', space=sflag, size = 0x8, scoped, tag = 'scoped memory for tpu_custom_call.1']
    #allocation4 [shape = 's32[2]{0}', space=sflag, size = 0x8, scoped, tag = 'scoped memory for tpu_custom_call.1']
    #allocation5 [shape = 'u8[16384]{0}', space=vmem, size = 0x4000, scoped, tag = 'input window, operand 4, single buffered']
    #allocation6 [shape = 's32[1]{0}', space=sflag, size = 0x4, scoped, tag = 'scoped memory for tpu_custom_call.1']
    #allocation7 [shape = 'u8[8192]{0}', space=vmem, size = 0x2000, scoped, tag = 'input window, operand 6, single buffered']
    #allocation8 [shape = 'u8[65536]{0}', space=vmem, size = 0x10000, scoped, tag = 'output window, operand 0']
    %13 = vsyncpa [#allocation3], 0
    %s14 = scalar_lea.sflag [#allocation3], 1
    %15 = vsyncpa %s14, 0
    %16 = vsyncpa [#allocation6], 0
    %17 = vsyncpa [#allocation4], 0
    %s18 = scalar_lea.sflag [#allocation4], 1
    %19 = vsyncpa %s18, 0
    loop: start=0, step=1, limit=4
    $region2: #{tpu_custom_call.1} parent=1 // loop_pre_header
      _
    $region3: #{tpu_custom_call.1} parent=1 // loop_header
      %s21 = sphi 0, %s25
      %p22 = scmp.ge.s32.totalorder %s21, 4
      %s31 = sphi 0, %s33
      %s34 = sphi 0, %s31
      %s35 = sphi 0, %s34
      %s51 = sphi 0, %s35
      %s55 = sphi 0, %s55
      %s57 = sphi 0, %s55
      %s58 = sphi 0, %s57
      %s72 = sphi 0, %s58
      %s76 = sphi 0, %s76
      %s78 = sphi 0, %s76
      %s79 = sphi 0, %s78
      %s93 = sphi 0, %s79
      %s97 = sphi 0, %s97
      %s99 = sphi 0, %s97
      %s100 = sphi 0, %s99
      %s114 = sphi 0, %s100
      %s118 = sphi 0, %s118
      %s120 = sphi 0, %s118
      %s121 = sphi 0, %s120
      %s135 = sphi 0, %s121
      %s139 = sphi 0, %s139
      %s141 = sphi 0, %s139
      %s142 = sphi 0, %s141
      %s156 = sphi 0, %s142
      %s160 = sphi 0, %s160
      %s162 = sphi 0, %s160
      %s163 = sphi 0, %s162
      %s177 = sphi 0, %s163
      %s181 = sphi 0, %s181
      %s183 = sphi 0, %s181
      %s184 = sphi 0, %s183
      %s198 = sphi 0, %s184
      %s204 = sphi 0, %s206
      %s207 = sphi 0, %s204
      %s208 = sphi 0, %s207
      %s224 = sphi 0, %s208
    $region4: #{tpu_custom_call.1} parent=1 // loop_header_branch
      %24 = sbr.rel (%p22) target = $region8
    $region5: #{tpu_custom_call.1} parent=1 // loop_body
      %s26 = ssub.s32 %s21, 1
      %s27 = ssub.s32 %s21, 2
      %s28 = sadd.s32 %s21, 1
      %s29 = ssub.s32 %s21, %s28
      %p30 = scmp.eq.s32.totalorder %s29, 0
      %s32 = sadd.s32 %s31, 1
      %s33 = scalar_select %p30, %s31, %s32
      %p36 = pneg %p30
      %p37 = scmp.eq.s32.totalorder %s21, 1
      %p38 = por %p36, %p37
      %p39 = scmp.ne.s32.totalorder %s31, %s34
      %p40 = scmp.eq.s32.totalorder %s21, 0
      %p41 = por %p39, %p40
      %p42 = scmp.ne.s32.totalorder %s31, %s34
      %p43 = scmp.eq.s32.totalorder %s26, 1
      %p44 = por %p42, %p43
      %p45 = scmp.ne.s32.totalorder %s34, %s35
      %p46 = scmp.eq.s32.totalorder %s26, 0
      %p47 = por %p45, %p46
      %p48 = scmp.ne.s32.totalorder %s34, %s35
      %p49 = scmp.eq.s32.totalorder %s27, 1
      %p50 = por %p48, %p49
      %p52 = scmp.ne.s32.totalorder %s35, %s51
      %p53 = scmp.eq.s32.totalorder %s27, 0
      %p54 = por %p52, %p53
      %s56 = sadd.s32 %s55, 1
      %p59 = scmp.eq.s32.totalorder %s21, 1
      %p60 = scmp.ne.s32.totalorder %s55, %s57
      %p61 = scmp.eq.s32.totalorder %s21, 0
      %p62 = por %p60, %p61
      %p63 = scmp.ne.s32.totalorder %s55, %s57
      %p64 = scmp.eq.s32.totalorder %s26, 1
      %p65 = por %p63, %p64
      %p66 = scmp.ne.s32.totalorder %s57, %s58
      %p67 = scmp.eq.s32.totalorder %s26, 0
      %p68 = por %p66, %p67
      %p69 = scmp.ne.s32.totalorder %s57, %s58
      %p70 = scmp.eq.s32.totalorder %s27, 1
      %p71 = por %p69, %p70
      %p73 = scmp.ne.s32.totalorder %s58, %s72
      %p74 = scmp.eq.s32.totalorder %s27, 0
      %p75 = por %p73, %p74
      %s77 = sadd.s32 %s76, 1
      %p80 = scmp.eq.s32.totalorder %s21, 1
      %p81 = scmp.ne.s32.totalorder %s76, %s78
      %p82 = scmp.eq.s32.totalorder %s21, 0
      %p83 = por %p81, %p82
      %p84 = scmp.ne.s32.totalorder %s76, %s78
      %p85 = scmp.eq.s32.totalorder %s26, 1
      %p86 = por %p84, %p85
      %p87 = scmp.ne.s32.totalorder %s78, %s79
      %p88 = scmp.eq.s32.totalorder %s26, 0
      %p89 = por %p87, %p88
      %p90 = scmp.ne.s32.totalorder %s78, %s79
      %p91 = scmp.eq.s32.totalorder %s27, 1
      %p92 = por %p90, %p91
      %p94 = scmp.ne.s32.totalorder %s79, %s93
      %p95 = scmp.eq.s32.totalorder %s27, 0
      %p96 = por %p94, %p95
      %s98 = sadd.s32 %s97, 1
      %p101 = scmp.eq.s32.totalorder %s21, 1
      %p102 = scmp.ne.s32.totalorder %s97, %s99
      %p103 = scmp.eq.s32.totalorder %s21, 0
      %p104 = por %p102, %p103
      %p105 = scmp.ne.s32.totalorder %s97, %s99
      %p106 = scmp.eq.s32.totalorder %s26, 1
      %p107 = por %p105, %p106
      %p108 = scmp.ne.s32.totalorder %s99, %s100
      %p109 = scmp.eq.s32.totalorder %s26, 0
      %p110 = por %p108, %p109
      %p111 = scmp.ne.s32.totalorder %s99, %s100
      %p112 = scmp.eq.s32.totalorder %s27, 1
      %p113 = por %p111, %p112
      %p115 = scmp.ne.s32.totalorder %s100, %s114
      %p116 = scmp.eq.s32.totalorder %s27, 0
      %p117 = por %p115, %p116
      %s119 = sadd.s32 %s118, 1
      %p122 = scmp.eq.s32.totalorder %s21, 1
      %p123 = scmp.ne.s32.totalorder %s118, %s120
      %p124 = scmp.eq.s32.totalorder %s21, 0
      %p125 = por %p123, %p124
      %p126 = scmp.ne.s32.totalorder %s118, %s120
      %p127 = scmp.eq.s32.totalorder %s26, 1
      %p128 = por %p126, %p127
      %p129 = scmp.ne.s32.totalorder %s120, %s121
      %p130 = scmp.eq.s32.totalorder %s26, 0
      %p131 = por %p129, %p130
      %p132 = scmp.ne.s32.totalorder %s120, %s121
      %p133 = scmp.eq.s32.totalorder %s27, 1
      %p134 = por %p132, %p133
      %p136 = scmp.ne.s32.totalorder %s121, %s135
      %p137 = scmp.eq.s32.totalorder %s27, 0
      %p138 = por %p136, %p137
      %s140 = sadd.s32 %s139, 1
      %p143 = scmp.eq.s32.totalorder %s21, 1
      %p144 = scmp.ne.s32.totalorder %s139, %s141
      %p145 = scmp.eq.s32.totalorder %s21, 0
      %p146 = por %p144, %p145
      %p147 = scmp.ne.s32.totalorder %s139, %s141
      %p148 = scmp.eq.s32.totalorder %s26, 1
      %p149 = por %p147, %p148
      %p150 = scmp.ne.s32.totalorder %s141, %s142
      %p151 = scmp.eq.s32.totalorder %s26, 0
      %p152 = por %p150, %p151
      %p153 = scmp.ne.s32.totalorder %s141, %s142
      %p154 = scmp.eq.s32.totalorder %s27, 1
      %p155 = por %p153, %p154
      %p157 = scmp.ne.s32.totalorder %s142, %s156
      %p158 = scmp.eq.s32.totalorder %s27, 0
      %p159 = por %p157, %p158
      %s161 = sadd.s32 %s160, 1
      %p164 = scmp.eq.s32.totalorder %s21, 1
      %p165 = scmp.ne.s32.totalorder %s160, %s162
      %p166 = scmp.eq.s32.totalorder %s21, 0
      %p167 = por %p165, %p166
      %p168 = scmp.ne.s32.totalorder %s160, %s162
      %p169 = scmp.eq.s32.totalorder %s26, 1
      %p170 = por %p168, %p169
      %p171 = scmp.ne.s32.totalorder %s162, %s163
      %p172 = scmp.eq.s32.totalorder %s26, 0
      %p173 = por %p171, %p172
      %p174 = scmp.ne.s32.totalorder %s162, %s163
      %p175 = scmp.eq.s32.totalorder %s27, 1
      %p176 = por %p174, %p175
      %p178 = scmp.ne.s32.totalorder %s163, %s177
      %p179 = scmp.eq.s32.totalorder %s27, 0
      %p180 = por %p178, %p179
      %s182 = sadd.s32 %s181, 1
      %p185 = scmp.eq.s32.totalorder %s21, 1
      %p186 = scmp.ne.s32.totalorder %s181, %s183
      %p187 = scmp.eq.s32.totalorder %s21, 0
      %p188 = por %p186, %p187
      %p189 = scmp.ne.s32.totalorder %s181, %s183
      %p190 = scmp.eq.s32.totalorder %s26, 1
      %p191 = por %p189, %p190
      %p192 = scmp.ne.s32.totalorder %s183, %s184
      %p193 = scmp.eq.s32.totalorder %s26, 0
      %p194 = por %p192, %p193
      %p195 = scmp.ne.s32.totalorder %s183, %s184
      %p196 = scmp.eq.s32.totalorder %s27, 1
      %p197 = por %p195, %p196
      %p199 = scmp.ne.s32.totalorder %s184, %s198
      %p200 = scmp.eq.s32.totalorder %s27, 0
      %p201 = por %p199, %p200
      %s202 = ssub.s32 %s21, %s28
      %p203 = scmp.eq.s32.totalorder %s202, 0
      %s205 = sadd.s32 %s204, 1
      %s206 = scalar_select %p203, %s204, %s205
      %p209 = pneg %p203
      %p210 = scmp.eq.s32.totalorder %s21, 1
      %p211 = por %p209, %p210
      %p212 = scmp.ne.s32.totalorder %s204, %s207
      %p213 = scmp.eq.s32.totalorder %s21, 0
      %p214 = por %p212, %p213
      %p215 = scmp.ne.s32.totalorder %s204, %s207
      %p216 = scmp.eq.s32.totalorder %s26, 1
      %p217 = por %p215, %p216
      %p218 = scmp.ne.s32.totalorder %s207, %s208
      %p219 = scmp.eq.s32.totalorder %s26, 0
      %p220 = por %p218, %p219
      %p221 = scmp.ne.s32.totalorder %s207, %s208
      %p222 = scmp.eq.s32.totalorder %s27, 1
      %p223 = por %p221, %p222
      %p225 = scmp.ne.s32.totalorder %s208, %s224
      %p226 = scmp.eq.s32.totalorder %s27, 0
      %p227 = por %p225, %p226
      %p228 = scmp.le.s32.totalorder 1, %s21
      %p229 = scmp.lt.s32.totalorder %s21, 3
      %p230 = pnand %p228, %p229
      %p231 = pneg %p230
      // Predicated region
      $region9: #{tpu_custom_call.1} parent=5 // pred_check
        _
      $region10: #{tpu_custom_call.1} parent=5 // pred_check_branch
        %233 = sbr.rel (%p230) target = $region12
      $region11: #{tpu_custom_call.1} parent=5 // pred_region
        %s234 = ssub.s32 %s21, 1
        // Predicated region
        $region13: #{tpu_custom_call.1} parent=11 // pred_check
          %p235 = pneg %p68
        $region14: #{tpu_custom_call.1} parent=11 // pred_check_branch
          %237 = sbr.rel (%p235) target = $region16
        $region15: #{tpu_custom_call.1} parent=11 // pred_region
          _
        $region16: #{tpu_custom_call.1} parent=11 // pred_fallthru
          _
        // Predicated region
        $region17: #{tpu_custom_call.1} parent=11 // pred_check
          %p238 = pneg %p89
        $region18: #{tpu_custom_call.1} parent=11 // pred_check_branch
          %240 = sbr.rel (%p238) target = $region20
        $region19: #{tpu_custom_call.1} parent=11 // pred_region
          _
        $region20: #{tpu_custom_call.1} parent=11 // pred_fallthru
          _
        // Predicated region
        $region21: #{tpu_custom_call.1} parent=11 // pred_check
          %p241 = pneg %p110
        $region22: #{tpu_custom_call.1} parent=11 // pred_check_branch
          %243 = sbr.rel (%p241) target = $region24
        $region23: #{tpu_custom_call.1} parent=11 // pred_region
          _
        $region24: #{tpu_custom_call.1} parent=11 // pred_fallthru
          _
        // Predicated region
        $region25: #{tpu_custom_call.1} parent=11 // pred_check
          %p244 = pneg %p131
        $region26: #{tpu_custom_call.1} parent=11 // pred_check_branch
          %246 = sbr.rel (%p244) target = $region28
        $region27: #{tpu_custom_call.1} parent=11 // pred_region
          %s248 = ssub.s32 512, 512
          %249 = vsyncadd [#allocation6], %s248
          %s250 = sshll.u32 [#allocation5], 4
          %s251 = int_to_ptr.vmem [resolvable:$true] %s250
          %256 = dma.hbm_to_vmem [thread:$0]  %s4, 512, %s251, [#allocation6], 256, 256, 16
        $region28: #{tpu_custom_call.1} parent=11 // pred_fallthru
          _
        // Predicated region
        $region29: #{tpu_custom_call.1} parent=11 // pred_check
          %p257 = pneg %p152
        $region30: #{tpu_custom_call.1} parent=11 // pred_check_branch
          %259 = sbr.rel (%p257) target = $region32
        $region31: #{tpu_custom_call.1} parent=11 // pred_region
          _
        $region32: #{tpu_custom_call.1} parent=11 // pred_fallthru
          _
        // Predicated region
        $region33: #{tpu_custom_call.1} parent=11 // pred_check
          %p260 = pneg %p173
        $region34: #{tpu_custom_call.1} parent=11 // pred_check_branch
          %262 = sbr.rel (%p260) target = $region36
        $region35: #{tpu_custom_call.1} parent=11 // pred_region
          %s264 = ssub.s32 256, 256
          %265 = vsyncadd [#allocation6], %s264
          %s266 = sshll.u32 [#allocation7], 4
          %s267 = int_to_ptr.vmem [resolvable:$true] %s266
          %272 = dma.hbm_to_vmem [thread:$0]  %s6, 256, %s267, [#allocation6], 128, 128, 8
        $region36: #{tpu_custom_call.1} parent=11 // pred_fallthru
          _
        // Predicated region
        $region37: #{tpu_custom_call.1} parent=11 // pred_check
          %p273 = pneg %p194
        $region38: #{tpu_custom_call.1} parent=11 // pred_check_branch
          %275 = sbr.rel (%p273) target = $region40
        $region39: #{tpu_custom_call.1} parent=11 // pred_region
          _
        $region40: #{tpu_custom_call.1} parent=11 // pred_fallthru
          _
      $region12: #{tpu_custom_call.1} parent=5 // pred_fallthru
        _
      %p276 = scmp.lt.s32.totalorder %s21, 2
      // Predicated region
      $region41: #{tpu_custom_call.1} parent=5 // pred_check
        %p277 = pneg %p276
      $region42: #{tpu_custom_call.1} parent=5 // pred_check_branch
        %279 = sbr.rel (%p277) target = $region44
      $region43: #{tpu_custom_call.1} parent=5 // pred_region
        // Predicated region
        $region45: #{tpu_custom_call.1} parent=43 // pred_check
          %p280 = pneg %p41
        $region46: #{tpu_custom_call.1} parent=43 // pred_check_branch
          %282 = sbr.rel (%p280) target = $region48
        $region47: #{tpu_custom_call.1} parent=43 // pred_region
          %s283 = sand.u32 %s31, 1
          %s284 = scalar_lea.sflag [#allocation3], %s283
          %s285 = sand.u32 %s31, 1
          %s286 = smul.addr %s285, 64
          %s287 = scalar_lea.vmem [#allocation2], %s286
          %s288 = smul.u32 2, %s21
          %s290 = ssub.s32 1024, 1024
          %291 = vsyncadd %s284, %s290
          %s292 = smul.addr %s288, 4
          %s293 = smul.addr %s292, 128
          %s294 = scalar_lea.hbm %s0, %s293
          %s295 = sshll.u32 %s287, 4
          %s296 = int_to_ptr.vmem [resolvable:$true] %s295
          %301 = dma.hbm_to_vmem [thread:$0]  %s294, 1024, %s296, %s284, 256, 256, 16
        $region48: #{tpu_custom_call.1} parent=43 // pred_fallthru
          _
      $region44: #{tpu_custom_call.1} parent=5 // pred_fallthru
        _
      %p302 = scmp.le.s32.totalorder 1, %s21
      %p303 = scmp.lt.s32.totalorder %s21, 3
      %p304 = pnand %p302, %p303
      %p305 = pneg %p304
      // Predicated region
      $region49: #{tpu_custom_call.1} parent=5 // pred_check
        _
      $region50: #{tpu_custom_call.1} parent=5 // pred_check_branch
        %307 = sbr.rel (%p304) target = $region52
      $region51: #{tpu_custom_call.1} parent=5 // pred_region
        %s308 = ssub.s32 %s21, 1
        %s309 = sand.u32 %s34, 1
        %s310 = scalar_lea.sflag [#allocation3], %s309
        %s311 = sand.u32 %s34, 1
        %s312 = smul.addr %s311, 64
        %s313 = scalar_lea.vmem [#allocation2], %s312
        // Predicated region
        $region53: #{tpu_custom_call.1} parent=51 // pred_check
          %p314 = pneg %p47
        $region54: #{tpu_custom_call.1} parent=51 // pred_check_branch
          %316 = sbr.rel (%p314) target = $region56
        $region55: #{tpu_custom_call.1} parent=51 // pred_region
          %317 = dma.done %s310, 1024
        $region56: #{tpu_custom_call.1} parent=51 // pred_fallthru
          _
        // Predicated region
        $region57: #{tpu_custom_call.1} parent=51 // pred_check
          %p318 = pneg %p131
        $region58: #{tpu_custom_call.1} parent=51 // pred_check_branch
          %320 = sbr.rel (%p318) target = $region60
        $region59: #{tpu_custom_call.1} parent=51 // pred_region
          %321 = dma.done [#allocation6], 512
        $region60: #{tpu_custom_call.1} parent=51 // pred_fallthru
          _
        // Predicated region
        $region61: #{tpu_custom_call.1} parent=51 // pred_check
          %p322 = pneg %p173
        $region62: #{tpu_custom_call.1} parent=51 // pred_check_branch
          %324 = sbr.rel (%p322) target = $region64
        $region63: #{tpu_custom_call.1} parent=51 // pred_region
          %325 = dma.done [#allocation6], 256
        $region64: #{tpu_custom_call.1} parent=51 // pred_fallthru
          _
        %s326 = sand.u32 %s34, 1
        %s327 = scalar_lea.sflag [#allocation3], %s326
        %s328 = sand.u32 %s34, 1
        %s329 = smul.addr %s328, 64
        %s330 = scalar_lea.vmem [#allocation2], %s329
        %p331 = pneg %p47
        %p332 = pneg %p44
        %p333 = pneg %p68
        %p334 = pneg %p65
        %p335 = pneg %p89
        %p336 = pneg %p86
        %p337 = pneg %p110
        %p338 = pneg %p107
        %p339 = pneg %p131
        %p340 = pneg %p128
        %p341 = pneg %p152
        %p342 = pneg %p149
        %p343 = pneg %p173
        %p344 = pneg %p170
        %p345 = pneg %p194
        %p346 = pneg %p191
        %p347 = pneg %p220
        %p348 = pneg %p217
        %s349 = sand.u32 %s207, 1
        %s350 = scalar_lea.sflag [#allocation4], %s349
        %s351 = sand.u32 %s207, 1
        %s352 = smul.addr %s351, 64
        %s353 = scalar_lea.vmem [#allocation8], %s352
        %s354 = smul.u32 2, %s26
        %s355 = smul.u32 2, %s26
        %v356 = vld [vmem:[%s2] sm:$0xff]
        %v357 = vld [vmem:[%s2 + $0x8] sm:$0xff]
        %v358 = vld [vmem:[#allocation5] sm:$0xff]
        %v359 = vld [vmem:[#allocation5 + $0x8] sm:$0xff]
        %v360 = vld [vmem:[#allocation5 + $0x10] sm:$0xff]
        %v361 = vld [vmem:[#allocation5 + $0x18] sm:$0xff]
        %v362 = vld [vmem:[#allocation7] sm:$0xff]
        %v363 = vld [vmem:[#allocation7 + $0x8] sm:$0xff]
        %v364 = vld [vmem:[%s3] sm:$0xff]
        %v365 = vld [vmem:[%s3 + $0x8] sm:$0xff]
        %v366 = vld [vmem:[%s5] sm:$0xff]
        %v367 = vld [vmem:[%s5 + $0x8] sm:$0xff]
        %v368 = vld [vmem:[%s7] sm:$0xff]
        %v369 = vld [vmem:[%s7 + $0x8] sm:$0xff]
        %v370 = vld [vmem:[%s1] ss:$8 sm:$0x3]
        %s371 = scalar_lea.vmem %s1, 1
        %v372 = vld [vmem:[%s371] ss:$8 sm:$0x3]
        %s373 = scalar_lea.vmem %s1, 2
        %v374 = vld [vmem:[%s373] ss:$8 sm:$0x3]
        %s375 = scalar_lea.vmem %s1, 3
        %v376 = vld [vmem:[%s375] ss:$8 sm:$0x3]
        %s377 = scalar_lea.vmem %s1, 5
        %v378 = vld [vmem:[%s377] ss:$8 sm:$0x3]
        %s379 = scalar_lea.vmem %s1, 6
        %v380 = vld [vmem:[%s379] ss:$8 sm:$0x3]
        %s381 = scalar_lea.vmem %s1, 7
        %v382 = vld [vmem:[%s381] ss:$8 sm:$0x3]
        %s383 = scalar_lea.vmem %s1, 16
        %v384 = vld [vmem:[%s383] ss:$8 sm:$0x3]
        %v385 = vld [vmem:[%s313] sm:$0xff]
        %v386 = vld [vmem:[%s313 + $0x8] sm:$0xff]
        %v387 = vld [vmem:[%s313 + $0x10] sm:$0xff]
        %v388 = vld [vmem:[%s313 + $0x18] sm:$0xff]
        %390 = vset.pattern.permute.xlu0 0
        %391 = vperm.xlu0 %390, %v364
        %v392 = vpop.permute.xlu0 %391
        %395 = vset.pattern.permute.xlu0 0
        %396 = vperm.xlu0 %395, %v365
        %v397 = vpop.permute.xlu0 %396
        %vm399 = vcmask 130048
        %v401 = vsel %vm399, %v356, 0
        %v404 = vsel %vm399, %v357, 0
        %406 = vmatprep.subr.mxu0 0.0
        %407 = vmatpush1.msra.mxu0 0.0
        %408 = vmatprep.subr.mxu0 0.0
        %409 = vmatpush1.msra.mxu0 0.0
        %410 = vmatprep.subr.mxu0 0.0
        %411 = vmatpush1.msra.mxu0 0.0
        %412 = vmatprep.subr.mxu0 0.0
        %413 = vmatpush1.msra.mxu0 0.0
        %414 = vmatprep.subr.mxu0 0.0
        %415 = vmatpush1.msra.mxu0 0.0
        %416 = vmatprep.subr.mxu0 0.0
        %417 = vmatpush1.msra.mxu0 0.0
        %418 = vmatprep.subr.mxu0 0.0
        %419 = vmatpush1.msra.mxu0 0.0
        %420 = vmatprep.subr.mxu0 0.0
        %421 = vmatpush1.msra.mxu0 0.0
        %422 = vmatprep.subr.mxu0 0.0
        %423 = vmatpush1.msra.mxu0 0.0
        %424 = vmatprep.subr.mxu0 0.0
        %425 = vmatpush1.msra.mxu0 0.0
        %426 = vmatprep.subr.mxu0 0.0
        %427 = vmatpush1.msra.mxu0 0.0
        %428 = vmatprep.subr.mxu0 0.0
        %429 = vmatpush1.msra.mxu0 0.0
        %430 = vmatprep.subr.mxu0 0.0
        %431 = vmatpush1.msra.mxu0 0.0
        %432 = vmatprep.subr.mxu0 0.0
        %433 = vmatpush1.msra.mxu0 0.0
        %434 = vmatprep.subr.mxu0 %v388
        %435 = vmatpush1.msra.mxu0 %v387
        %436 = vmatprep.subr.mxu0 %v386
        %437 = vmatpush1.msra.mxu0 %v385
        %438 = vmatprep.subr.mxu0 0.0
        %439 = vmatpush2.msra.mxu0 0.0
        %440 = vmatprep.subr.mxu0 0.0
        %441 = vmatpush2.msra.mxu0 0.0
        %442 = vmatprep.subr.mxu0 0.0
        %443 = vmatpush2.msra.mxu0 0.0
        %444 = vmatprep.subr.mxu0 0.0
        %445 = vmatpush2.msra.mxu0 0.0
        %446 = vmatprep.subr.mxu0 0.0
        %447 = vmatpush2.msra.mxu0 0.0
        %448 = vmatprep.subr.mxu0 0.0
        %449 = vmatpush2.msra.mxu0 0.0
        %450 = vmatprep.subr.mxu0 0.0
        %451 = vmatpush2.msra.mxu0 0.0
        %452 = vmatprep.subr.mxu0 0.0
        %453 = vmatpush2.msra.mxu0 0.0
        %454 = vmatprep.subr.mxu0 0.0
        %455 = vmatpush2.msra.mxu0 0.0
        %456 = vmatprep.subr.mxu0 0.0
        %457 = vmatpush2.msra.mxu0 0.0
        %458 = vmatprep.subr.mxu0 0.0
        %459 = vmatpush2.msra.mxu0 0.0
        %460 = vmatprep.subr.mxu0 0.0
        %461 = vmatpush2.msra.mxu0 0.0
        %462 = vmatprep.subr.mxu0 0.0
        %463 = vmatpush2.msra.mxu0 0.0
        %464 = vmatprep.subr.mxu0 0.0
        %465 = vmatpush2.msra.mxu0 0.0
        %466 = vmatprep.subr.mxu0 0.0
        %467 = vmatpush2.msra.mxu0 0.0
        %468 = vmatprep.subr.mxu0 0.0
        %469 = vmatpush2.msra.mxu0 0.0
        %470 = vmatprep.mubr.f32.mxu0 0.0
        %471 = vmatmul.mubr.f32.gmra.mxu0 %v401
        %v472 = vpop.f32.mrf.mxu0
        %v473 = vadd.f32 %v392, %v472
        %v474 = vpop.f32.mrf.mxu0
        %v475 = vadd.f32 %v392, %v474
        %476 = vmatprep.mubr.f32.mxu0 0.0
        %477 = vmatmul.mubr.f32.gmra.mxu0 %v404
        %v478 = vpop.f32.mrf.mxu0
        %v479 = vadd.f32 %v397, %v478
        %v480 = vpop.f32.mrf.mxu0
        %v481 = vadd.f32 %v397, %v480
        %482 = vdwg.mxu0
        %v483 = vmax.f32 %v473, 0.0
        %v484 = vmax.f32 %v475, 0.0
        %v485 = vmax.f32 %v479, 0.0
        %v486 = vmax.f32 %v481, 0.0
        %487 = vrot.lane.b32.xlu0 %v483, 17
        %v488 = vpop.permute.xlu0 %487
        %489 = vrot.lane.b32.xlu0 %v485, 17
        %v490 = vpop.permute.xlu0 %489
        %491 = vrot.lane.b32.xlu0 %v484, 17
        %v492 = vpop.permute.xlu0 %491
        %493 = vrot.lane.b32.xlu0 %v486, 17
        %v494 = vpop.permute.xlu0 %493
        %v495 = vlaneseq
        %v496 = vand.u32 %v495, 127
        %vm497 = vcmp.lt.s32.totalorder %v496, 17
        %v498 = vsel %vm497, %v488, %v492
        %v499 = vsel %vm497, %v490, %v494
        %v500 = vsel %vm497, %v492, %v488
        %v501 = vsel %vm497, %v494, %v490
        %v503 = vlaneseq
        %v504 = vshrl.u32 %v503, 7
        %v505 = vsub.s32 0, %v504
        %v506 = vrot.slane %v370, %v505
        %v507 = vlaneseq
        %v508 = vshrl.u32 %v507, 7
        %v509 = vsub.s32 1, %v508
        %v510 = vrot.slane %v370, %v509
        %v513 = vmul.f32 %v500, %v506
        %v514 = vmul.f32 %v498, %v510
        %v515 = vmul.f32 %v501, %v506
        %v516 = vmul.f32 %v499, %v510
        %517 = vrot.lane.b32.xlu0 %v483, 16
        %v518 = vpop.permute.xlu0 %517
        %519 = vrot.lane.b32.xlu0 %v485, 16
        %v520 = vpop.permute.xlu0 %519
        %521 = vrot.lane.b32.xlu0 %v484, 16
        %v522 = vpop.permute.xlu0 %521
        %523 = vrot.lane.b32.xlu0 %v486, 16
        %v524 = vpop.permute.xlu0 %523
        %vm525 = vcmp.lt.s32.totalorder %v496, 16
        %v526 = vsel %vm525, %v518, %v522
        %v527 = vsel %vm525, %v520, %v524
        %v528 = vsel %vm525, %v522, %v518
        %v529 = vsel %vm525, %v524, %v520
        %v531 = vlaneseq
        %v532 = vshrl.u32 %v531, 7
        %v533 = vsub.s32 0, %v532
        %v534 = vrot.slane %v372, %v533
        %v535 = vlaneseq
        %v536 = vshrl.u32 %v535, 7
        %v537 = vsub.s32 1, %v536
        %v538 = vrot.slane %v372, %v537
        %v541 = vmul.f32 %v528, %v534
        %v542 = vmul.f32 %v526, %v538
        %v543 = vmul.f32 %v529, %v534
        %v544 = vmul.f32 %v527, %v538
        %545 = vrot.lane.b32.xlu0 %v483, 15
        %v546 = vpop.permute.xlu0 %545
        %547 = vrot.lane.b32.xlu0 %v485, 15
        %v548 = vpop.permute.xlu0 %547
        %549 = vrot.lane.b32.xlu0 %v484, 15
        %v550 = vpop.permute.xlu0 %549
        %551 = vrot.lane.b32.xlu0 %v486, 15
        %v552 = vpop.permute.xlu0 %551
        %vm553 = vcmp.lt.s32.totalorder %v496, 15
        %v554 = vsel %vm553, %v546, %v550
        %v555 = vsel %vm553, %v548, %v552
        %v556 = vsel %vm553, %v550, %v546
        %v557 = vsel %vm553, %v552, %v548
        %v559 = vlaneseq
        %v560 = vshrl.u32 %v559, 7
        %v561 = vsub.s32 0, %v560
        %v562 = vrot.slane %v374, %v561
        %v563 = vlaneseq
        %v564 = vshrl.u32 %v563, 7
        %v565 = vsub.s32 1, %v564
        %v566 = vrot.slane %v374, %v565
        %v569 = vmul.f32 %v556, %v562
        %v570 = vmul.f32 %v554, %v566
        %v571 = vmul.f32 %v557, %v562
        %v572 = vmul.f32 %v555, %v566
        %573 = vrot.lane.b32.xlu0 %v483, 1
        %v574 = vpop.permute.xlu0 %573
        %575 = vrot.lane.b32.xlu0 %v485, 1
        %v576 = vpop.permute.xlu0 %575
        %577 = vrot.lane.b32.xlu0 %v484, 1
        %v578 = vpop.permute.xlu0 %577
        %579 = vrot.lane.b32.xlu0 %v486, 1
        %v580 = vpop.permute.xlu0 %579
        %vm581 = vcmp.lt.s32.totalorder %v496, 1
        %v582 = vsel %vm581, %v574, %v578
        %v583 = vsel %vm581, %v576, %v580
        %v584 = vsel %vm581, %v578, %v574
        %v585 = vsel %vm581, %v580, %v576
        %v587 = vlaneseq
        %v588 = vshrl.u32 %v587, 7
        %v589 = vsub.s32 0, %v588
        %v590 = vrot.slane %v376, %v589
        %v591 = vlaneseq
        %v592 = vshrl.u32 %v591, 7
        %v593 = vsub.s32 1, %v592
        %v594 = vrot.slane %v376, %v593
        %v597 = vmul.f32 %v584, %v590
        %v598 = vmul.f32 %v582, %v594
        %v599 = vmul.f32 %v585, %v590
        %v600 = vmul.f32 %v583, %v594
        %601 = vrot.lane.b32.xlu0 %v483, 127
        %v602 = vpop.permute.xlu0 %601
        %603 = vrot.lane.b32.xlu0 %v485, 127
        %v604 = vpop.permute.xlu0 %603
        %605 = vrot.lane.b32.xlu0 %v484, 127
        %v606 = vpop.permute.xlu0 %605
        %607 = vrot.lane.b32.xlu0 %v486, 127
        %v608 = vpop.permute.xlu0 %607
        %vm609 = vcmp.lt.s32.totalorder %v496, 127
        %v610 = vsel %vm609, %v602, %v606
        %v611 = vsel %vm609, %v604, %v608
        %v612 = vsel %vm609, %v606, %v602
        %v613 = vsel %vm609, %v608, %v604
        %v615 = vlaneseq
        %v616 = vshrl.u32 %v615, 7
        %v617 = vsub.s32 0, %v616
        %v618 = vrot.slane %v378, %v617
        %v619 = vlaneseq
        %v620 = vshrl.u32 %v619, 7
        %v621 = vsub.s32 1, %v620
        %v622 = vrot.slane %v378, %v621
        %v625 = vmul.f32 %v610, %v618
        %v626 = vmul.f32 %v612, %v622
        %v627 = vmul.f32 %v611, %v618
        %v628 = vmul.f32 %v613, %v622
        %629 = vrot.lane.b32.xlu0 %v483, 113
        %v630 = vpop.permute.xlu0 %629
        %631 = vrot.lane.b32.xlu0 %v485, 113
        %v632 = vpop.permute.xlu0 %631
        %633 = vrot.lane.b32.xlu0 %v484, 113
        %v634 = vpop.permute.xlu0 %633
        %635 = vrot.lane.b32.xlu0 %v486, 113
        %v636 = vpop.permute.xlu0 %635
        %vm637 = vcmp.lt.s32.totalorder %v496, 113
        %v638 = vsel %vm637, %v630, %v634
        %v639 = vsel %vm637, %v632, %v636
        %v640 = vsel %vm637, %v634, %v630
        %v641 = vsel %vm637, %v636, %v632
        %v643 = vlaneseq
        %v644 = vshrl.u32 %v643, 7
        %v645 = vsub.s32 0, %v644
        %v646 = vrot.slane %v380, %v645
        %v647 = vlaneseq
        %v648 = vshrl.u32 %v647, 7
        %v649 = vsub.s32 1, %v648
        %v650 = vrot.slane %v380, %v649
        %v653 = vmul.f32 %v638, %v646
        %v654 = vmul.f32 %v640, %v650
        %v655 = vmul.f32 %v639, %v646
        %v656 = vmul.f32 %v641, %v650
        %657 = vrot.lane.b32.xlu0 %v483, 112
        %v658 = vpop.permute.xlu0 %657
        %659 = vrot.lane.b32.xlu0 %v485, 112
        %v660 = vpop.permute.xlu0 %659
        %661 = vrot.lane.b32.xlu0 %v484, 112
        %v662 = vpop.permute.xlu0 %661
        %663 = vrot.lane.b32.xlu0 %v486, 112
        %v664 = vpop.permute.xlu0 %663
        %vm665 = vcmp.lt.s32.totalorder %v496, 112
        %v666 = vsel %vm665, %v658, %v662
        %v667 = vsel %vm665, %v660, %v664
        %v668 = vsel %vm665, %v662, %v658
        %v669 = vsel %vm665, %v664, %v660
        %v671 = vlaneseq
        %v672 = vshrl.u32 %v671, 7
        %v673 = vsub.s32 0, %v672
        %v674 = vrot.slane %v382, %v673
        %v675 = vlaneseq
        %v676 = vshrl.u32 %v675, 7
        %v677 = vsub.s32 1, %v676
        %v678 = vrot.slane %v382, %v677
        %v681 = vmul.f32 %v666, %v674
        %v682 = vmul.f32 %v668, %v678
        %v683 = vmul.f32 %v667, %v674
        %v684 = vmul.f32 %v669, %v678
        %685 = vrot.lane.b32.xlu0 %v483, 111
        %v686 = vpop.permute.xlu0 %685
        %687 = vrot.lane.b32.xlu0 %v485, 111
        %v688 = vpop.permute.xlu0 %687
        %689 = vrot.lane.b32.xlu0 %v484, 111
        %v690 = vpop.permute.xlu0 %689
        %691 = vrot.lane.b32.xlu0 %v486, 111
        %v692 = vpop.permute.xlu0 %691
        %vm693 = vcmp.lt.s32.totalorder %v496, 111
        %v694 = vsel %vm693, %v686, %v690
        %v695 = vsel %vm693, %v688, %v692
        %v696 = vsel %vm693, %v690, %v686
        %v697 = vsel %vm693, %v692, %v688
        %v699 = vlaneseq
        %v700 = vshrl.u32 %v699, 7
        %v701 = vsub.s32 0, %v700
        %v702 = vrot.slane %v384, %v701
        %v703 = vlaneseq
        %v704 = vshrl.u32 %v703, 7
        %v705 = vsub.s32 1, %v704
        %v706 = vrot.slane %v384, %v705
        %v709 = vmul.f32 %v694, %v702
        %v710 = vmul.f32 %v696, %v706
        %v711 = vmul.f32 %v695, %v702
        %v712 = vmul.f32 %v697, %v706
        %714 = vset.pattern.permute.xlu0 0
        %715 = vperm.xlu0 %714, %v366
        %v716 = vpop.permute.xlu0 %715
        %719 = vset.pattern.permute.xlu0 0
        %720 = vperm.xlu0 %719, %v367
        %v721 = vpop.permute.xlu0 %720
        %v724 = vsel %vm399, %v359, 0
        %v727 = vsel %vm399, %v361, 0
        %729 = vmatprep.subr.mxu0 %v684
        %730 = vmatpush1.msra.mxu0 %v683
        %731 = vmatprep.subr.mxu0 %v682
        %732 = vmatpush1.msra.mxu0 %v681
        %733 = vmatprep.subr.mxu0 %v656
        %734 = vmatpush1.msra.mxu0 %v655
        %735 = vmatprep.subr.mxu0 %v654
        %736 = vmatpush1.msra.mxu0 %v653
        %737 = vmatprep.subr.mxu0 %v628
        %738 = vmatpush1.msra.mxu0 %v627
        %739 = vmatprep.subr.mxu0 %v626
        %740 = vmatpush1.msra.mxu0 %v625
        %741 = vmatprep.subr.mxu0 %v486
        %742 = vmatpush1.msra.mxu0 %v485
        %743 = vmatprep.subr.mxu0 %v484
        %744 = vmatpush1.msra.mxu0 %v483
        %745 = vmatprep.subr.mxu0 %v600
        %746 = vmatpush1.msra.mxu0 %v599
        %747 = vmatprep.subr.mxu0 %v598
        %748 = vmatpush1.msra.mxu0 %v597
        %749 = vmatprep.subr.mxu0 %v572
        %750 = vmatpush1.msra.mxu0 %v571
        %751 = vmatprep.subr.mxu0 %v570
        %752 = vmatpush1.msra.mxu0 %v569
        %753 = vmatprep.subr.mxu0 %v544
        %754 = vmatpush1.msra.mxu0 %v543
        %755 = vmatprep.subr.mxu0 %v542
        %756 = vmatpush1.msra.mxu0 %v541
        %757 = vmatprep.subr.mxu0 %v516
        %758 = vmatpush1.msra.mxu0 %v515
        %759 = vmatprep.subr.mxu0 %v514
        %760 = vmatpush1.msra.mxu0 %v513
        %761 = vmatprep.subr.mxu0 0.0
        %762 = vmatpush2.msra.mxu0 0.0
        %763 = vmatprep.subr.mxu0 0.0
        %764 = vmatpush2.msra.mxu0 0.0
        %765 = vmatprep.subr.mxu0 0.0
        %766 = vmatpush2.msra.mxu0 0.0
        %767 = vmatprep.subr.mxu0 0.0
        %768 = vmatpush2.msra.mxu0 0.0
        %769 = vmatprep.subr.mxu0 0.0
        %770 = vmatpush2.msra.mxu0 0.0
        %771 = vmatprep.subr.mxu0 0.0
        %772 = vmatpush2.msra.mxu0 0.0
        %773 = vmatprep.subr.mxu0 0.0
        %774 = vmatpush2.msra.mxu0 0.0
        %775 = vmatprep.subr.mxu0 0.0
        %776 = vmatpush2.msra.mxu0 0.0
        %777 = vmatprep.subr.mxu0 0.0
        %778 = vmatpush2.msra.mxu0 0.0
        %779 = vmatprep.subr.mxu0 0.0
        %780 = vmatpush2.msra.mxu0 0.0
        %781 = vmatprep.subr.mxu0 0.0
        %782 = vmatpush2.msra.mxu0 0.0
        %783 = vmatprep.subr.mxu0 0.0
        %784 = vmatpush2.msra.mxu0 0.0
        %785 = vmatprep.subr.mxu0 0.0
        %786 = vmatpush2.msra.mxu0 0.0
        %787 = vmatprep.subr.mxu0 0.0
        %788 = vmatpush2.msra.mxu0 0.0
        %789 = vmatprep.subr.mxu0 %v712
        %790 = vmatpush2.msra.mxu0 %v711
        %791 = vmatprep.subr.mxu0 %v710
        %792 = vmatpush2.msra.mxu0 %v709
        %793 = vmatprep.mubr.f32.mxu0 %v724
        %794 = vmatmul.mubr.f32.gmra.mxu0 %v358
        %v795 = vpop.f32.mrf.mxu0
        %v796 = vadd.f32 %v716, %v795
        %v797 = vpop.f32.mrf.mxu0
        %v798 = vadd.f32 %v716, %v797
        %799 = vmatprep.mubr.f32.mxu0 %v727
        %800 = vmatmul.mubr.f32.gmra.mxu0 %v360
        %v801 = vpop.f32.mrf.mxu0
        %v802 = vadd.f32 %v721, %v801
        %v803 = vpop.f32.mrf.mxu0
        %v804 = vadd.f32 %v721, %v803
        %805 = vdwg.mxu0
        %v806 = vmax.f32 %v796, 0.0
        %v807 = vmax.f32 %v798, 0.0
        %v808 = vmax.f32 %v802, 0.0
        %v809 = vmax.f32 %v804, 0.0
        %811 = vset.pattern.permute.xlu0 0
        %812 = vperm.xlu0 %811, %v368
        %v813 = vpop.permute.xlu0 %812
        %816 = vset.pattern.permute.xlu0 0
        %817 = vperm.xlu0 %816, %v369
        %v818 = vpop.permute.xlu0 %817
        %v821 = vsel %vm399, %v362, 0
        %v824 = vsel %vm399, %v363, 0
        %826 = vmatprep.subr.mxu0 0.0
        %827 = vmatpush1.msra.mxu0 0.0
        %828 = vmatprep.subr.mxu0 0.0
        %829 = vmatpush1.msra.mxu0 0.0
        %830 = vmatprep.subr.mxu0 0.0
        %831 = vmatpush1.msra.mxu0 0.0
        %832 = vmatprep.subr.mxu0 0.0
        %833 = vmatpush1.msra.mxu0 0.0
        %834 = vmatprep.subr.mxu0 0.0
        %835 = vmatpush1.msra.mxu0 0.0
        %836 = vmatprep.subr.mxu0 0.0
        %837 = vmatpush1.msra.mxu0 0.0
        %838 = vmatprep.subr.mxu0 0.0
        %839 = vmatpush1.msra.mxu0 0.0
        %840 = vmatprep.subr.mxu0 0.0
        %841 = vmatpush1.msra.mxu0 0.0
        %842 = vmatprep.subr.mxu0 0.0
        %843 = vmatpush1.msra.mxu0 0.0
        %844 = vmatprep.subr.mxu0 0.0
        %845 = vmatpush1.msra.mxu0 0.0
        %846 = vmatprep.subr.mxu0 0.0
        %847 = vmatpush1.msra.mxu0 0.0
        %848 = vmatprep.subr.mxu0 0.0
        %849 = vmatpush1.msra.mxu0 0.0
        %850 = vmatprep.subr.mxu0 0.0
        %851 = vmatpush1.msra.mxu0 0.0
        %852 = vmatprep.subr.mxu0 0.0
        %853 = vmatpush1.msra.mxu0 0.0
        %854 = vmatprep.subr.mxu0 %v809
        %855 = vmatpush1.msra.mxu0 %v808
        %856 = vmatprep.subr.mxu0 %v807
        %857 = vmatpush1.msra.mxu0 %v806
        %858 = vmatprep.subr.mxu0 0.0
        %859 = vmatpush2.msra.mxu0 0.0
        %860 = vmatprep.subr.mxu0 0.0
        %861 = vmatpush2.msra.mxu0 0.0
        %862 = vmatprep.subr.mxu0 0.0
        %863 = vmatpush2.msra.mxu0 0.0
        %864 = vmatprep.subr.mxu0 0.0
        %865 = vmatpush2.msra.mxu0 0.0
        %866 = vmatprep.subr.mxu0 0.0
        %867 = vmatpush2.msra.mxu0 0.0
        %868 = vmatprep.subr.mxu0 0.0
        %869 = vmatpush2.msra.mxu0 0.0
        %870 = vmatprep.subr.mxu0 0.0
        %871 = vmatpush2.msra.mxu0 0.0
        %872 = vmatprep.subr.mxu0 0.0
        %873 = vmatpush2.msra.mxu0 0.0
        %874 = vmatprep.subr.mxu0 0.0
        %875 = vmatpush2.msra.mxu0 0.0
        %876 = vmatprep.subr.mxu0 0.0
        %877 = vmatpush2.msra.mxu0 0.0
        %878 = vmatprep.subr.mxu0 0.0
        %879 = vmatpush2.msra.mxu0 0.0
        %880 = vmatprep.subr.mxu0 0.0
        %881 = vmatpush2.msra.mxu0 0.0
        %882 = vmatprep.subr.mxu0 0.0
        %883 = vmatpush2.msra.mxu0 0.0
        %884 = vmatprep.subr.mxu0 0.0
        %885 = vmatpush2.msra.mxu0 0.0
        %886 = vmatprep.subr.mxu0 0.0
        %887 = vmatpush2.msra.mxu0 0.0
        %888 = vmatprep.subr.mxu0 0.0
        %889 = vmatpush2.msra.mxu0 0.0
        %890 = vmatprep.mubr.f32.mxu0 0.0
        %891 = vmatmul.mubr.f32.gmra.mxu0 %v821
        %v892 = vpop.f32.mrf.mxu0
        %v893 = vadd.f32 %v813, %v892
        %v894 = vpop.f32.mrf.mxu0
        %v895 = vadd.f32 %v813, %v894
        %896 = vmatprep.mubr.f32.mxu0 0.0
        %897 = vmatmul.mubr.f32.gmra.mxu0 %v824
        %v898 = vpop.f32.mrf.mxu0
        %v899 = vadd.f32 %v818, %v898
        %v900 = vpop.f32.mrf.mxu0
        %v901 = vadd.f32 %v818, %v900
        %902 = vdwg.mxu0
        %v903 = vadd.f32 %v893, %v385
        %v904 = vadd.f32 %v895, %v386
        %v905 = vadd.f32 %v899, %v387
        %v906 = vadd.f32 %v901, %v388
        %v907 = vmax.f32 %v903, 0.0
        %v908 = vmax.f32 %v904, 0.0
        %v909 = vmax.f32 %v905, 0.0
        %v910 = vmax.f32 %v906, 0.0
        %911 = vst [vmem:[%s353] sm:$0xff] %v907
        %912 = vst [vmem:[%s353 + $0x8] sm:$0xff] %v908
        %913 = vst [vmem:[%s353 + $0x10] sm:$0xff] %v909
        %914 = vst [vmem:[%s353 + $0x18] sm:$0xff] %v910
        %s915 = scalar_lea.vmem %s313, 32 [#allocation2]
        %v916 = vld [vmem:[%s915] sm:$0xff]
        %v917 = vld [vmem:[%s915 + $0x8] sm:$0xff]
        %v918 = vld [vmem:[%s915 + $0x10] sm:$0xff]
        %v919 = vld [vmem:[%s915 + $0x18] sm:$0xff]
        %920 = vmatprep.subr.mxu0 0.0
        %921 = vmatpush1.msra.mxu0 0.0
        %922 = vmatprep.subr.mxu0 0.0
        %923 = vmatpush1.msra.mxu0 0.0
        %924 = vmatprep.subr.mxu0 0.0
        %925 = vmatpush1.msra.mxu0 0.0
        %926 = vmatprep.subr.mxu0 0.0
        %927 = vmatpush1.msra.mxu0 0.0
        %928 = vmatprep.subr.mxu0 0.0
        %929 = vmatpush1.msra.mxu0 0.0
        %930 = vmatprep.subr.mxu0 0.0
        %931 = vmatpush1.msra.mxu0 0.0
        %932 = vmatprep.subr.mxu0 0.0
        %933 = vmatpush1.msra.mxu0 0.0
        %934 = vmatprep.subr.mxu0 0.0
        %935 = vmatpush1.msra.mxu0 0.0
        %936 = vmatprep.subr.mxu0 0.0
        %937 = vmatpush1.msra.mxu0 0.0
        %938 = vmatprep.subr.mxu0 0.0
        %939 = vmatpush1.msra.mxu0 0.0
        %940 = vmatprep.subr.mxu0 0.0
        %941 = vmatpush1.msra.mxu0 0.0
        %942 = vmatprep.subr.mxu0 0.0
        %943 = vmatpush1.msra.mxu0 0.0
        %944 = vmatprep.subr.mxu0 0.0
        %945 = vmatpush1.msra.mxu0 0.0
        %946 = vmatprep.subr.mxu0 0.0
        %947 = vmatpush1.msra.mxu0 0.0
        %948 = vmatprep.subr.mxu0 %v919
        %949 = vmatpush1.msra.mxu0 %v918
        %950 = vmatprep.subr.mxu0 %v917
        %951 = vmatpush1.msra.mxu0 %v916
        %952 = vmatprep.subr.mxu0 0.0
        %953 = vmatpush2.msra.mxu0 0.0
        %954 = vmatprep.subr.mxu0 0.0
        %955 = vmatpush2.msra.mxu0 0.0
        %956 = vmatprep.subr.mxu0 0.0
        %957 = vmatpush2.msra.mxu0 0.0
        %958 = vmatprep.subr.mxu0 0.0
        %959 = vmatpush2.msra.mxu0 0.0
        %960 = vmatprep.subr.mxu0 0.0
        %961 = vmatpush2.msra.mxu0 0.0
        %962 = vmatprep.subr.mxu0 0.0
        %963 = vmatpush2.msra.mxu0 0.0
        %964 = vmatprep.subr.mxu0 0.0
        %965 = vmatpush2.msra.mxu0 0.0
        %966 = vmatprep.subr.mxu0 0.0
        %967 = vmatpush2.msra.mxu0 0.0
        %968 = vmatprep.subr.mxu0 0.0
        %969 = vmatpush2.msra.mxu0 0.0
        %970 = vmatprep.subr.mxu0 0.0
        %971 = vmatpush2.msra.mxu0 0.0
        %972 = vmatprep.subr.mxu0 0.0
        %973 = vmatpush2.msra.mxu0 0.0
        %974 = vmatprep.subr.mxu0 0.0
        %975 = vmatpush2.msra.mxu0 0.0
        %976 = vmatprep.subr.mxu0 0.0
        %977 = vmatpush2.msra.mxu0 0.0
        %978 = vmatprep.subr.mxu0 0.0
        %979 = vmatpush2.msra.mxu0 0.0
        %980 = vmatprep.subr.mxu0 0.0
        %981 = vmatpush2.msra.mxu0 0.0
        %982 = vmatprep.subr.mxu0 0.0
        %983 = vmatpush2.msra.mxu0 0.0
        %984 = vmatprep.mubr.f32.mxu0 0.0
        %985 = vmatmul.mubr.f32.gmra.mxu0 %v401
        %v986 = vpop.f32.mrf.mxu0
        %v987 = vadd.f32 %v392, %v986
        %v988 = vpop.f32.mrf.mxu0
        %v989 = vadd.f32 %v392, %v988
        %990 = vmatprep.mubr.f32.mxu0 0.0
        %991 = vmatmul.mubr.f32.gmra.mxu0 %v404
        %v992 = vpop.f32.mrf.mxu0
        %v993 = vadd.f32 %v397, %v992
        %v994 = vpop.f32.mrf.mxu0
        %v995 = vadd.f32 %v397, %v994
        %996 = vdwg.mxu0
        %v997 = vmax.f32 %v987, 0.0
        %v998 = vmax.f32 %v989, 0.0
        %v999 = vmax.f32 %v993, 0.0
        %v1000 = vmax.f32 %v995, 0.0
        %1001 = vrot.lane.b32.xlu0 %v997, 17
        %v1002 = vpop.permute.xlu0 %1001
        %1003 = vrot.lane.b32.xlu0 %v999, 17
        %v1004 = vpop.permute.xlu0 %1003
        %1005 = vrot.lane.b32.xlu0 %v998, 17
        %v1006 = vpop.permute.xlu0 %1005
        %1007 = vrot.lane.b32.xlu0 %v1000, 17
        %v1008 = vpop.permute.xlu0 %1007
        %v1009 = vsel %vm497, %v1002, %v1006
        %v1010 = vsel %vm497, %v1004, %v1008
        %v1011 = vsel %vm497, %v1006, %v1002
        %v1012 = vsel %vm497, %v1008, %v1004
        %v1013 = vmul.f32 %v1011, %v506
        %v1014 = vmul.f32 %v1009, %v510
        %v1015 = vmul.f32 %v1012, %v506
        %v1016 = vmul.f32 %v1010, %v510
        %1017 = vrot.lane.b32.xlu0 %v997, 16
        %v1018 = vpop.permute.xlu0 %1017
        %1019 = vrot.lane.b32.xlu0 %v999, 16
        %v1020 = vpop.permute.xlu0 %1019
        %1021 = vrot.lane.b32.xlu0 %v998, 16
        %v1022 = vpop.permute.xlu0 %1021
        %1023 = vrot.lane.b32.xlu0 %v1000, 16
        %v1024 = vpop.permute.xlu0 %1023
        %v1025 = vsel %vm525, %v1018, %v1022
        %v1026 = vsel %vm525, %v1020, %v1024
        %v1027 = vsel %vm525, %v1022, %v1018
        %v1028 = vsel %vm525, %v1024, %v1020
        %v1029 = vmul.f32 %v1027, %v534
        %v1030 = vmul.f32 %v1025, %v538
        %v1031 = vmul.f32 %v1028, %v534
        %v1032 = vmul.f32 %v1026, %v538
        %1033 = vrot.lane.b32.xlu0 %v997, 15
        %v1034 = vpop.permute.xlu0 %1033
        %1035 = vrot.lane.b32.xlu0 %v999, 15
        %v1036 = vpop.permute.xlu0 %1035
        %1037 = vrot.lane.b32.xlu0 %v998, 15
        %v1038 = vpop.permute.xlu0 %1037
        %1039 = vrot.lane.b32.xlu0 %v1000, 15
        %v1040 = vpop.permute.xlu0 %1039
        %v1041 = vsel %vm553, %v1034, %v1038
        %v1042 = vsel %vm553, %v1036, %v1040
        %v1043 = vsel %vm553, %v1038, %v1034
        %v1044 = vsel %vm553, %v1040, %v1036
        %v1045 = vmul.f32 %v1043, %v562
        %v1046 = vmul.f32 %v1041, %v566
        %v1047 = vmul.f32 %v1044, %v562
        %v1048 = vmul.f32 %v1042, %v566
        %1049 = vrot.lane.b32.xlu0 %v997, 1
        %v1050 = vpop.permute.xlu0 %1049
        %1051 = vrot.lane.b32.xlu0 %v999, 1
        %v1052 = vpop.permute.xlu0 %1051
        %1053 = vrot.lane.b32.xlu0 %v998, 1
        %v1054 = vpop.permute.xlu0 %1053
        %1055 = vrot.lane.b32.xlu0 %v1000, 1
        %v1056 = vpop.permute.xlu0 %1055
        %v1057 = vsel %vm581, %v1050, %v1054
        %v1058 = vsel %vm581, %v1052, %v1056
        %v1059 = vsel %vm581, %v1054, %v1050
        %v1060 = vsel %vm581, %v1056, %v1052
        %v1061 = vmul.f32 %v1059, %v590
        %v1062 = vmul.f32 %v1057, %v594
        %v1063 = vmul.f32 %v1060, %v590
        %v1064 = vmul.f32 %v1058, %v594
        %1065 = vrot.lane.b32.xlu0 %v997, 127
        %v1066 = vpop.permute.xlu0 %1065
        %1067 = vrot.lane.b32.xlu0 %v999, 127
        %v1068 = vpop.permute.xlu0 %1067
        %1069 = vrot.lane.b32.xlu0 %v998, 127
        %v1070 = vpop.permute.xlu0 %1069
        %1071 = vrot.lane.b32.xlu0 %v1000, 127
        %v1072 = vpop.permute.xlu0 %1071
        %v1073 = vsel %vm609, %v1066, %v1070
        %v1074 = vsel %vm609, %v1068, %v1072
        %v1075 = vsel %vm609, %v1070, %v1066
        %v1076 = vsel %vm609, %v1072, %v1068
        %v1077 = vmul.f32 %v1073, %v618
        %v1078 = vmul.f32 %v1075, %v622
        %v1079 = vmul.f32 %v1074, %v618
        %v1080 = vmul.f32 %v1076, %v622
        %1081 = vrot.lane.b32.xlu0 %v997, 113
        %v1082 = vpop.permute.xlu0 %1081
        %1083 = vrot.lane.b32.xlu0 %v999, 113
        %v1084 = vpop.permute.xlu0 %1083
        %1085 = vrot.lane.b32.xlu0 %v998, 113
        %v1086 = vpop.permute.xlu0 %1085
        %1087 = vrot.lane.b32.xlu0 %v1000, 113
        %v1088 = vpop.permute.xlu0 %1087
        %v1089 = vsel %vm637, %v1082, %v1086
        %v1090 = vsel %vm637, %v1084, %v1088
        %v1091 = vsel %vm637, %v1086, %v1082
        %v1092 = vsel %vm637, %v1088, %v1084
        %v1093 = vmul.f32 %v1089, %v646
        %v1094 = vmul.f32 %v1091, %v650
        %v1095 = vmul.f32 %v1090, %v646
        %v1096 = vmul.f32 %v1092, %v650
        %1097 = vrot.lane.b32.xlu0 %v997, 112
        %v1098 = vpop.permute.xlu0 %1097
        %1099 = vrot.lane.b32.xlu0 %v999, 112
        %v1100 = vpop.permute.xlu0 %1099
        %1101 = vrot.lane.b32.xlu0 %v998, 112
        %v1102 = vpop.permute.xlu0 %1101
        %1103 = vrot.lane.b32.xlu0 %v1000, 112
        %v1104 = vpop.permute.xlu0 %1103
        %v1105 = vsel %vm665, %v1098, %v1102
        %v1106 = vsel %vm665, %v1100, %v1104
        %v1107 = vsel %vm665, %v1102, %v1098
        %v1108 = vsel %vm665, %v1104, %v1100
        %v1109 = vmul.f32 %v1105, %v674
        %v1110 = vmul.f32 %v1107, %v678
        %v1111 = vmul.f32 %v1106, %v674
        %v1112 = vmul.f32 %v1108, %v678
        %1113 = vrot.lane.b32.xlu0 %v997, 111
        %v1114 = vpop.permute.xlu0 %1113
        %1115 = vrot.lane.b32.xlu0 %v999, 111
        %v1116 = vpop.permute.xlu0 %1115
        %1117 = vrot.lane.b32.xlu0 %v998, 111
        %v1118 = vpop.permute.xlu0 %1117
        %1119 = vrot.lane.b32.xlu0 %v1000, 111
        %v1120 = vpop.permute.xlu0 %1119
        %v1121 = vsel %vm693, %v1114, %v1118
        %v1122 = vsel %vm693, %v1116, %v1120
        %v1123 = vsel %vm693, %v1118, %v1114
        %v1124 = vsel %vm693, %v1120, %v1116
        %v1125 = vmul.f32 %v1121, %v702
        %v1126 = vmul.f32 %v1123, %v706
        %v1127 = vmul.f32 %v1122, %v702
        %v1128 = vmul.f32 %v1124, %v706
        %1129 = vmatprep.subr.mxu0 %v1112
        %1130 = vmatpush1.msra.mxu0 %v1111
        %1131 = vmatprep.subr.mxu0 %v1110
        %1132 = vmatpush1.msra.mxu0 %v1109
        %1133 = vmatprep.subr.mxu0 %v1096
        %1134 = vmatpush1.msra.mxu0 %v1095
        %1135 = vmatprep.subr.mxu0 %v1094
        %1136 = vmatpush1.msra.mxu0 %v1093
        %1137 = vmatprep.subr.mxu0 %v1080
        %1138 = vmatpush1.msra.mxu0 %v1079
        %1139 = vmatprep.subr.mxu0 %v1078
        %1140 = vmatpush1.msra.mxu0 %v1077
        %1141 = vmatprep.subr.mxu0 %v1000
        %1142 = vmatpush1.msra.mxu0 %v999
        %1143 = vmatprep.subr.mxu0 %v998
        %1144 = vmatpush1.msra.mxu0 %v997
        %1145 = vmatprep.subr.mxu0 %v1064
        %1146 = vmatpush1.msra.mxu0 %v1063
        %1147 = vmatprep.subr.mxu0 %v1062
        %1148 = vmatpush1.msra.mxu0 %v1061
        %1149 = vmatprep.subr.mxu0 %v1048
        %1150 = vmatpush1.msra.mxu0 %v1047
        %1151 = vmatprep.subr.mxu0 %v1046
        %1152 = vmatpush1.msra.mxu0 %v1045
        %1153 = vmatprep.subr.mxu0 %v1032
        %1154 = vmatpush1.msra.mxu0 %v1031
        %1155 = vmatprep.subr.mxu0 %v1030
        %1156 = vmatpush1.msra.mxu0 %v1029
        %1157 = vmatprep.subr.mxu0 %v1016
        %1158 = vmatpush1.msra.mxu0 %v1015
        %1159 = vmatprep.subr.mxu0 %v1014
        %1160 = vmatpush1.msra.mxu0 %v1013
        %1161 = vmatprep.subr.mxu0 0.0
        %1162 = vmatpush2.msra.mxu0 0.0
        %1163 = vmatprep.subr.mxu0 0.0
        %1164 = vmatpush2.msra.mxu0 0.0
        %1165 = vmatprep.subr.mxu0 0.0
        %1166 = vmatpush2.msra.mxu0 0.0
        %1167 = vmatprep.subr.mxu0 0.0
        %1168 = vmatpush2.msra.mxu0 0.0
        %1169 = vmatprep.subr.mxu0 0.0
        %1170 = vmatpush2.msra.mxu0 0.0
        %1171 = vmatprep.subr.mxu0 0.0
        %1172 = vmatpush2.msra.mxu0 0.0
        %1173 = vmatprep.subr.mxu0 0.0
        %1174 = vmatpush2.msra.mxu0 0.0
        %1175 = vmatprep.subr.mxu0 0.0
        %1176 = vmatpush2.msra.mxu0 0.0
        %1177 = vmatprep.subr.mxu0 0.0
        %1178 = vmatpush2.msra.mxu0 0.0
        %1179 = vmatprep.subr.mxu0 0.0
        %1180 = vmatpush2.msra.mxu0 0.0
        %1181 = vmatprep.subr.mxu0 0.0
        %1182 = vmatpush2.msra.mxu0 0.0
        %1183 = vmatprep.subr.mxu0 0.0
        %1184 = vmatpush2.msra.mxu0 0.0
        %1185 = vmatprep.subr.mxu0 0.0
        %1186 = vmatpush2.msra.mxu0 0.0
        %1187 = vmatprep.subr.mxu0 0.0
        %1188 = vmatpush2.msra.mxu0 0.0
        %1189 = vmatprep.subr.mxu0 %v1128
        %1190 = vmatpush2.msra.mxu0 %v1127
        %1191 = vmatprep.subr.mxu0 %v1126
        %1192 = vmatpush2.msra.mxu0 %v1125
        %1193 = vmatprep.mubr.f32.mxu0 %v724
        %1194 = vmatmul.mubr.f32.gmra.mxu0 %v358
        %v1195 = vpop.f32.mrf.mxu0
        %v1196 = vadd.f32 %v716, %v1195
        %v1197 = vpop.f32.mrf.mxu0
        %v1198 = vadd.f32 %v716, %v1197
        %1199 = vmatprep.mubr.f32.mxu0 %v727
        %1200 = vmatmul.mubr.f32.gmra.mxu0 %v360
        %v1201 = vpop.f32.mrf.mxu0
        %v1202 = vadd.f32 %v721, %v1201
        %v1203 = vpop.f32.mrf.mxu0
        %v1204 = vadd.f32 %v721, %v1203
        %1205 = vdwg.mxu0
        %v1206 = vmax.f32 %v1196, 0.0
        %v1207 = vmax.f32 %v1198, 0.0
        %v1208 = vmax.f32 %v1202, 0.0
        %v1209 = vmax.f32 %v1204, 0.0
        %1210 = vmatprep.subr.mxu0 0.0
        %1211 = vmatpush1.msra.mxu0 0.0
        %1212 = vmatprep.subr.mxu0 0.0
        %1213 = vmatpush1.msra.mxu0 0.0
        %1214 = vmatprep.subr.mxu0 0.0
        %1215 = vmatpush1.msra.mxu0 0.0
        %1216 = vmatprep.subr.mxu0 0.0
        %1217 = vmatpush1.msra.mxu0 0.0
        %1218 = vmatprep.subr.mxu0 0.0
        %1219 = vmatpush1.msra.mxu0 0.0
        %1220 = vmatprep.subr.mxu0 0.0
        %1221 = vmatpush1.msra.mxu0 0.0
        %1222 = vmatprep.subr.mxu0 0.0
        %1223 = vmatpush1.msra.mxu0 0.0
        %1224 = vmatprep.subr.mxu0 0.0
        %1225 = vmatpush1.msra.mxu0 0.0
        %1226 = vmatprep.subr.mxu0 0.0
        %1227 = vmatpush1.msra.mxu0 0.0
        %1228 = vmatprep.subr.mxu0 0.0
        %1229 = vmatpush1.msra.mxu0 0.0
        %1230 = vmatprep.subr.mxu0 0.0
        %1231 = vmatpush1.msra.mxu0 0.0
        %1232 = vmatprep.subr.mxu0 0.0
        %1233 = vmatpush1.msra.mxu0 0.0
        %1234 = vmatprep.subr.mxu0 0.0
        %1235 = vmatpush1.msra.mxu0 0.0
        %1236 = vmatprep.subr.mxu0 0.0
        %1237 = vmatpush1.msra.mxu0 0.0
        %1238 = vmatprep.subr.mxu0 %v1209
        %1239 = vmatpush1.msra.mxu0 %v1208
        %1240 = vmatprep.subr.mxu0 %v1207
        %1241 = vmatpush1.msra.mxu0 %v1206
        %1242 = vmatprep.subr.mxu0 0.0
        %1243 = vmatpush2.msra.mxu0 0.0
        %1244 = vmatprep.subr.mxu0 0.0
        %1245 = vmatpush2.msra.mxu0 0.0
        %1246 = vmatprep.subr.mxu0 0.0
        %1247 = vmatpush2.msra.mxu0 0.0
        %1248 = vmatprep.subr.mxu0 0.0
        %1249 = vmatpush2.msra.mxu0 0.0
        %1250 = vmatprep.subr.mxu0 0.0
        %1251 = vmatpush2.msra.mxu0 0.0
        %1252 = vmatprep.subr.mxu0 0.0
        %1253 = vmatpush2.msra.mxu0 0.0
        %1254 = vmatprep.subr.mxu0 0.0
        %1255 = vmatpush2.msra.mxu0 0.0
        %1256 = vmatprep.subr.mxu0 0.0
        %1257 = vmatpush2.msra.mxu0 0.0
        %1258 = vmatprep.subr.mxu0 0.0
        %1259 = vmatpush2.msra.mxu0 0.0
        %1260 = vmatprep.subr.mxu0 0.0
        %1261 = vmatpush2.msra.mxu0 0.0
        %1262 = vmatprep.subr.mxu0 0.0
        %1263 = vmatpush2.msra.mxu0 0.0
        %1264 = vmatprep.subr.mxu0 0.0
        %1265 = vmatpush2.msra.mxu0 0.0
        %1266 = vmatprep.subr.mxu0 0.0
        %1267 = vmatpush2.msra.mxu0 0.0
        %1268 = vmatprep.subr.mxu0 0.0
        %1269 = vmatpush2.msra.mxu0 0.0
        %1270 = vmatprep.subr.mxu0 0.0
        %1271 = vmatpush2.msra.mxu0 0.0
        %1272 = vmatprep.subr.mxu0 0.0
        %1273 = vmatpush2.msra.mxu0 0.0
        %1274 = vmatprep.mubr.f32.mxu0 0.0
        %1275 = vmatmul.mubr.f32.gmra.mxu0 %v821
        %v1276 = vpop.f32.mrf.mxu0
        %v1277 = vadd.f32 %v813, %v1276
        %v1278 = vpop.f32.mrf.mxu0
        %v1279 = vadd.f32 %v813, %v1278
        %1280 = vmatprep.mubr.f32.mxu0 0.0
        %1281 = vmatmul.mubr.f32.gmra.mxu0 %v824
        %v1282 = vpop.f32.mrf.mxu0
        %v1283 = vadd.f32 %v818, %v1282
        %v1284 = vpop.f32.mrf.mxu0
        %v1285 = vadd.f32 %v818, %v1284
        %1286 = vdwg.mxu0
        %v1287 = vadd.f32 %v1277, %v916
        %v1288 = vadd.f32 %v1279, %v917
        %v1289 = vadd.f32 %v1283, %v918
        %v1290 = vadd.f32 %v1285, %v919
        %v1291 = vmax.f32 %v1287, 0.0
        %v1292 = vmax.f32 %v1288, 0.0
        %v1293 = vmax.f32 %v1289, 0.0
        %v1294 = vmax.f32 %v1290, 0.0
        %s1295 = scalar_lea.vmem %s353, 32 [#allocation8]
        %1296 = vst [vmem:[%s1295] sm:$0xff] %v1291
        %1297 = vst [vmem:[%s1295 + $0x8] sm:$0xff] %v1292
        %1298 = vst [vmem:[%s1295 + $0x10] sm:$0xff] %v1293
        %1299 = vst [vmem:[%s1295 + $0x18] sm:$0xff] %v1294
        %s1300 = sand.u32 %s207, 1
        %s1301 = scalar_lea.sflag [#allocation4], %s1300
        %s1302 = sand.u32 %s207, 1
        %s1303 = smul.addr %s1302, 64
        %s1304 = scalar_lea.vmem [#allocation8], %s1303
        // Predicated region
        $region65: #{tpu_custom_call.1} parent=51 // pred_check
          %p1305 = pneg %p217
        $region66: #{tpu_custom_call.1} parent=51 // pred_check_branch
          %1307 = sbr.rel (%p1305) target = $region68
        $region67: #{tpu_custom_call.1} parent=51 // pred_region
          %s1308 = smul.u32 2, %s26
          %s1310 = ssub.s32 1024, 1024
          %1311 = vsyncadd %s1301, %s1310
          %s1312 = smul.addr %s1308, 4
          %s1313 = smul.addr %s1312, 128
          %s1314 = scalar_lea.hbm %s8, %s1313
          %s1315 = sshll.u32 %s1304, 4
          %s1316 = int_to_ptr.vmem [resolvable:$true] %s1315
          %1321 = dma.vmem_to_hbm [thread:$0]  %s1316, 1024, %s1314, %s1301, 256, 256, 16
        $region68: #{tpu_custom_call.1} parent=51 // pred_fallthru
          _
      $region52: #{tpu_custom_call.1} parent=5 // pred_fallthru
        _
      %p1322 = scmp.le.s32.totalorder 2, %s21
      // Predicated region
      $region69: #{tpu_custom_call.1} parent=5 // pred_check
        %p1323 = pneg %p1322
      $region70: #{tpu_custom_call.1} parent=5 // pred_check_branch
        %1325 = sbr.rel (%p1323) target = $region72
      $region71: #{tpu_custom_call.1} parent=5 // pred_region
        %s1326 = ssub.s32 %s21, 2
        // Predicated region
        $region73: #{tpu_custom_call.1} parent=71 // pred_check
          %p1327 = pneg %p223
        $region74: #{tpu_custom_call.1} parent=71 // pred_check_branch
          %1329 = sbr.rel (%p1327) target = $region76
        $region75: #{tpu_custom_call.1} parent=71 // pred_region
          %s1330 = sand.u32 %s208, 1
          %s1331 = scalar_lea.sflag [#allocation4], %s1330
          %s1332 = sand.u32 %s208, 1
          %s1333 = smul.addr %s1332, 64
          %s1334 = scalar_lea.vmem [#allocation8], %s1333
          %1335 = dma.done %s1331, 1024
        $region76: #{tpu_custom_call.1} parent=71 // pred_fallthru
          _
      $region72: #{tpu_custom_call.1} parent=5 // pred_fallthru
        _
    $region6: #{tpu_custom_call.1} parent=1 // loop_footer
      %s25 = sadd.s32 1, %s21
    $region7: #{tpu_custom_call.1} parent=1 // loop_footer_branch
      %20 = sbr.rel target = $region3
    $region8: #{tpu_custom_call.1} parent=1 // loop_exit
      _
    %1336 = vsyncpa [#allocation3], 1
    %s1337 = scalar_lea.sflag [#allocation3], 1
    %1338 = vsyncpa %s1337, 1
    %1339 = vsyncpa [#allocation6], 1
    %1340 = vsyncpa [#allocation4], 1
    %s1341 = scalar_lea.sflag [#allocation4], 1
    %1342 = vsyncpa %s1341, 1

</llo_original>
